<compile_context>
chip_gen: v7x
topology: tpu7x:2x2x1
jax: 0.10.0
libtpu: 0.0.40
codegen_flags: <defaults>
</compile_context>

<pallas_src>
import jax
import jax.numpy as jnp
import numpy as np
from jax import lax
from jax.experimental import pallas as pl
from jax.experimental.pallas import tpu as pltpu

LN_EPS = 1e-5  # torch.nn.LayerNorm default


def _round_up(x, m):
    return ((x + m - 1) // m) * m


def _pick_tile(total, preferred, align):
    """Largest t <= preferred with total % t == 0 and t % align == 0.

    Falls back to `total` (a full-extent block is always legal)."""
    if total <= preferred:
        return total
    t = (preferred // align) * align
    while t >= align:
        if total % t == 0:
            return t
        t -= align
    return total


# ----------------------------------------------------------------------------
# Kernel A: input LayerNorm + fused projections (left/right/left-gate/right-gate
# /output-gate as ONE matmul) -> masked+gated left/right (channel-major) + gate.
# ----------------------------------------------------------------------------
def _proj_kernel(x_ref, mask_ref, lnw_ref, lnb_ref, w_ref, b_ref,
                 left_ref, right_ref, gate_ref):
    c = left_ref.shape[0]

    x = x_ref[...].astype(jnp.float32)                       # (TM, D)
    mu = jnp.mean(x, axis=-1, keepdims=True)
    var = jnp.mean(jnp.square(x - mu), axis=-1, keepdims=True)
    ln = (x - mu) * lax.rsqrt(var + LN_EPS)
    ln = ln * lnw_ref[...] + lnb_ref[...]                    # (TM, D)

    # One wide MXU matmul instead of five narrow ones.
    proj = jnp.dot(ln, w_ref[...], preferred_element_type=jnp.float32) + b_ref[...]

    mask = mask_ref[...]                                     # (TM, 1)
    left = proj[:, 0 * c:1 * c] * mask * jax.nn.sigmoid(proj[:, 2 * c:3 * c])
    right = proj[:, 1 * c:2 * c] * mask * jax.nn.sigmoid(proj[:, 3 * c:4 * c])
    gate = jax.nn.sigmoid(proj[:, 4 * c:])                   # (TM, D)

    # Channel-major stores (2-D transpose, XLU) feed kernel B without relayout.
    left_ref[...] = jnp.transpose(left).astype(left_ref.dtype)    # (C, TM)
    right_ref[...] = jnp.transpose(right).astype(right_ref.dtype)  # (C, TM)
    gate_ref[...] = gate.astype(gate_ref.dtype)                    # (TM, D)


# ----------------------------------------------------------------------------
# Kernel B: triangle einsum on the MXU.
# act_cm[c, i, j] = sum_k left_cm[c, i, k] * right_cm[c, j, k]
# Grid (i, j, k) with f32 accumulator; k marked "arbitrary".
# ----------------------------------------------------------------------------
def _tri_kernel(left_ref, right_ref, act_ref, acc_ref):
    @pl.when(pl.program_id(2) == 0)
    def _():
        acc_ref[...] = jnp.zeros_like(acc_ref)

    acc_ref[...] += lax.dot_general(
        left_ref[...], right_ref[...],
        dimension_numbers=(((2,), (2,)), ((0,), (0,))),   # contract k, batch c
        preferred_element_type=jnp.float32)               # (C, TI, TJ)

    @pl.when(pl.program_id(2) == pl.num_programs(2) - 1)
    def _():
        act_ref[...] = acc_ref[...].astype(act_ref.dtype)


# ----------------------------------------------------------------------------
# Kernel C: center LayerNorm + output projection + final gating.
# NOTE: kept as a separate kernel so the only in-kernel transpose is a plain
# 2-D (C, TM) -> (TM, C); fusing it into kernel B would require a 3-D
# (C,TI,TJ)->(TI,TJ,C) transpose per block.
# ----------------------------------------------------------------------------
def _out_kernel(act_ref, gate_ref, clnw_ref, clnb_ref, wo_ref, bo_ref, out_ref):
    a = jnp.transpose(act_ref[...].astype(jnp.float32))      # (C, TM) -> (TM, C)
    mu = jnp.mean(a, axis=-1, keepdims=True)
    var = jnp.mean(jnp.square(a - mu), axis=-1, keepdims=True)
    a_ln = (a - mu) * lax.rsqrt(var + LN_EPS)
    a_ln = a_ln * clnw_ref[...] + clnb_ref[...]              # (TM, C)

    out = jnp.dot(a_ln, wo_ref[...], preferred_element_type=jnp.float32) + bo_ref[...]
    out_ref[...] = (out * gate_ref[...].astype(jnp.float32)).astype(out_ref.dtype)


# ----------------------------------------------------------------------------
# Wrapper
# ----------------------------------------------------------------------------
def triangle_multiplication(pair_act, pair_mask, params, *,
                            interm_dtype=jnp.bfloat16,
                            tm=None, ti=None, tj=None, tk=None):
    N, N2, D = pair_act.shape
    assert N == N2
    C = params["wl"].shape[1]

    # Pad so all grids divide exactly; padded rows have mask == 0, so padded k
    # contributes exactly 0 to the triangle sum and padded (i, j) rows are
    # sliced off at the end.
    Np = max(16, _round_up(N, 16))
    if Np != N:
        pad = Np - N
        pair_act = jnp.pad(pair_act, ((0, pad), (0, pad), (0, 0)))
        pair_mask = jnp.pad(pair_mask, ((0, pad), (0, pad)))
    M = Np * Np

    # Tile picks (all dividing exactly; lane dims are 128-aligned or full).
    # TODO(synk): very large N not divisible by 128 falls back to full-extent
    # j/k blocks which can exceed the 64 MiB VMEM budget; pad further or tune.
    tm = tm or _pick_tile(M, 1024, 256)     # kernel A / C row tile
    ti = ti or _pick_tile(Np, 128, 8)       # kernel B i tile
    tj = tj or _pick_tile(Np, 128, 128)     # kernel B j tile (lane of act block)
    tk = tk or _pick_tile(Np, 256, 128)     # kernel B k (contraction) tile

    x_flat = pair_act.reshape(M, D).astype(jnp.float32)
    mask_flat = pair_mask.reshape(M, 1).astype(jnp.float32)

    # Fuse the five projection weights into one (D, 4C + D) matmul.
    w_all = jnp.concatenate([params["wl"], params["wr"], params["wlg"],
                             params["wrg"], params["wg"]], axis=1).astype(jnp.float32)
    b_all = jnp.concatenate([params["bl"], params["br"], params["blg"],
                             params["brg"], params["bg"]], axis=1).astype(jnp.float32)
    P = 4 * C + D

    const2d = lambda i: (0, 0)

    # ---------------- Kernel A ----------------
    left_cm, right_cm, gate = pl.pallas_call(
        _proj_kernel,
        out_shape=(jax.ShapeDtypeStruct((C, M), interm_dtype),
                   jax.ShapeDtypeStruct((C, M), interm_dtype),
                   jax.ShapeDtypeStruct((M, D), interm_dtype)),
        grid=(M // tm,),
        in_specs=[
            pl.BlockSpec((tm, D), lambda i: (i, 0)),
            pl.BlockSpec((tm, 1), lambda i: (i, 0)),
            pl.BlockSpec((1, D), const2d), pl.BlockSpec((1, D), const2d),  # input LN
            pl.BlockSpec((D, P), const2d), pl.BlockSpec((1, P), const2d),  # fused proj
        ],
        out_specs=(pl.BlockSpec((C, tm), lambda i: (0, i)),
                   pl.BlockSpec((C, tm), lambda i: (0, i)),
                   pl.BlockSpec((tm, D), lambda i: (i, 0))),
        compiler_params=pltpu.CompilerParams(dimension_semantics=("parallel",)),
    )(x_flat, mask_flat, params["ln_w"], params["ln_b"], w_all, b_all)

    left_cm = left_cm.reshape(C, Np, Np)
    right_cm = right_cm.reshape(C, Np, Np)

    # ---------------- Kernel B ----------------
    act_cm = pl.pallas_call(
        _tri_kernel,
        out_shape=jax.ShapeDtypeStruct((C, Np, Np), interm_dtype),
        grid=(Np // ti, Np // tj, Np // tk),
        in_specs=[
            pl.BlockSpec((C, ti, tk), lambda i, j, k: (0, i, k)),
            pl.BlockSpec((C, tj, tk), lambda i, j, k: (0, j, k)),
        ],
        out_specs=pl.BlockSpec((C, ti, tj), lambda i, j, k: (0, i, j)),
        scratch_shapes=[pltpu.VMEM((C, ti, tj), jnp.float32)],
        compiler_params=pltpu.CompilerParams(
            dimension_semantics=("parallel", "parallel", "arbitrary"),
            vmem_limit_bytes=64 * 1024 * 1024),
    )(left_cm, right_cm)

    # ---------------- Kernel C ----------------
    out = pl.pallas_call(
        _out_kernel,
        out_shape=jax.ShapeDtypeStruct((M, D), jnp.float32),
        grid=(M // tm,),
        in_specs=[
            pl.BlockSpec((C, tm), lambda i: (0, i)),
            pl.BlockSpec((tm, D), lambda i: (i, 0)),
            pl.BlockSpec((1, C), const2d), pl.BlockSpec((1, C), const2d),  # center LN
            pl.BlockSpec((C, D), const2d), pl.BlockSpec((1, D), const2d),  # out proj
        ],
        out_specs=pl.BlockSpec((tm, D), lambda i: (i, 0)),
        compiler_params=pltpu.CompilerParams(dimension_semantics=("parallel",)),
    )(act_cm.reshape(C, M), gate, params["cln_w"], params["cln_b"],
      params["wo"], params["bo"])

    out = out.reshape(Np, Np, D)
    if Np != N:
        out = out[:N, :N, :]
    return out


# ----------------------------------------------------------------------------
# Pure-JAX reference (mirrors the PyTorch forward exactly)
# ----------------------------------------------------------------------------
def reference(pair_act, pair_mask, params):
    def ln(x, w, b):
        mu = jnp.mean(x, axis=-1, keepdims=True)
        var = jnp.mean((x - mu) ** 2, axis=-1, keepdims=True)
        return (x - mu) * lax.rsqrt(var + LN_EPS) * w.reshape(-1) + b.reshape(-1)

    mask = pair_mask[..., None].astype(jnp.float32)
    input_act = ln(pair_act, params["ln_w"], params["ln_b"])
    left = (input_act @ params["wl"] + params["bl"].reshape(-1)) * mask
    right = (input_act @ params["wr"] + params["br"].reshape(-1)) * mask
    left = left * jax.nn.sigmoid(input_act @ params["wlg"] + params["blg"].reshape(-1))
    right = right * jax.nn.sigmoid(input_act @ params["wrg"] + params["brg"].reshape(-1))
    act = jnp.einsum("ikc,jkc->ijc", left, right)
    act = ln(act, params["cln_w"], params["cln_b"])
    act = act @ params["wo"] + params["bo"].reshape(-1)
    gate = jax.nn.sigmoid(input_act @ params["wg"] + params["bg"].reshape(-1))
    return act * gate


def make_params(key, D, C):
    ks = jax.random.split(key, 14)
    s = 0.1
    rn = lambda k, shape: (jax.random.normal(k, shape, jnp.float32) * s)
    return dict(
        ln_w=jnp.ones((1, D), jnp.float32), ln_b=jnp.zeros((1, D), jnp.float32),
        wl=rn(ks[0], (D, C)), bl=rn(ks[1], (1, C)),
        wr=rn(ks[2], (D, C)), br=rn(ks[3], (1, C)),
        wlg=rn(ks[4], (D, C)), blg=rn(ks[5], (1, C)),
        wrg=rn(ks[6], (D, C)), brg=rn(ks[7], (1, C)),
        wg=rn(ks[8], (D, D)), bg=rn(ks[9], (1, D)),
        cln_w=jnp.ones((1, C), jnp.float32), cln_b=jnp.zeros((1, C), jnp.float32),
        wo=rn(ks[10], (C, D)), bo=rn(ks[11], (1, D)),
    )


if __name__ == "__main__":
    N, D, C = 16, 32, 32  # N_res, pair_dim, num_intermediate_channel

    key = jax.random.PRNGKey(0)
    k_act, k_mask, k_par = jax.random.split(key, 3)
    pair_act = jax.random.normal(k_act, (N, N, D), jnp.float32)
    pair_mask = (jax.random.uniform(k_mask, (N, N)) > 0.2).astype(jnp.float32)
    params = make_params(k_par, D, C)

    ref = reference(pair_act, pair_mask, params)

    # 1) f32 intermediates: tight check against the f32 reference.
    out_f32 = jax.block_until_ready(
        triangle_multiplication(pair_act, pair_mask, params, interm_dtype=jnp.float32))
    np.testing.assert_allclose(np.asarray(out_f32), np.asarray(ref),
                               rtol=2e-3, atol=2e-3)

    # 2) bf16 intermediates (default, HBM-optimized path): looser check.
    out_bf16 = jax.block_until_ready(
        triangle_multiplication(pair_act, pair_mask, params))
    np.testing.assert_allclose(np.asarray(out_bf16), np.asarray(ref),
                               rtol=5e-2, atol=5e-2)

    # 3) Non-divisible N_res (exercises padding path), f32 intermediates.
    N3 = 20
    k_act3, k_mask3 = jax.random.split(jax.random.PRNGKey(1), 2)
    pair_act3 = jax.random.normal(k_act3, (N3, N3, D), jnp.float32)
    pair_mask3 = (jax.random.uniform(k_mask3, (N3, N3)) > 0.2).astype(jnp.float32)
    out3 = jax.block_until_ready(
        triangle_multiplication(pair_act3, pair_mask3, params, interm_dtype=jnp.float32))
    ref3 = reference(pair_act3, pair_mask3, params)
    np.testing.assert_allclose(np.asarray(out3), np.asarray(ref3),
                               rtol=2e-3, atol=2e-3)

    print("KERNEL_OK")
</pallas_src>

<mosaic_0001>
module attributes {stable_mosaic.version = 11 : i64} {
  func.func @_proj_kernel(%arg0: i32, %arg1: memref<256x32xf32, #tpu.memory_space<vmem>>, %arg2: memref<256x1xf32, #tpu.memory_space<vmem>>, %arg3: memref<1x32xf32, #tpu.memory_space<vmem>>, %arg4: memref<1x32xf32, #tpu.memory_space<vmem>>, %arg5: memref<32x160xf32, #tpu.memory_space<vmem>>, %arg6: memref<1x160xf32, #tpu.memory_space<vmem>>, %arg7: memref<32x256xf32, #tpu.memory_space<vmem>>, %arg8: memref<32x256xf32, #tpu.memory_space<vmem>>, %arg9: memref<256x32xf32, #tpu.memory_space<vmem>>) attributes {dimension_semantics = [#tpu.dimension_semantics<parallel>], iteration_bounds = array<i64: 1>, scalar_prefetch = 0 : i64, scratch_operands = 0 : i64, tpu.core_type = #tpu.core_type<tc>, window_params = [{transform_indices = @transform_0, window_bounds = array<i64: 256, 32>}, {transform_indices = @transform_1, window_bounds = array<i64: 256, 1>}, {pipeline_mode = #tpu.pipeline_mode<synchronous>, transform_indices = @transform_2, window_bounds = array<i64: 1, 32>}, {pipeline_mode = #tpu.pipeline_mode<synchronous>, transform_indices = @transform_3, window_bounds = array<i64: 1, 32>}, {pipeline_mode = #tpu.pipeline_mode<synchronous>, transform_indices = @transform_4, window_bounds = array<i64: 32, 160>}, {pipeline_mode = #tpu.pipeline_mode<synchronous>, transform_indices = @transform_5, window_bounds = array<i64: 1, 160>}, {transform_indices = @transform_6, window_bounds = array<i64: 32, 256>}, {transform_indices = @transform_7, window_bounds = array<i64: 32, 256>}, {transform_indices = @transform_8, window_bounds = array<i64: 256, 32>}]} {
    %c0 = arith.constant 0 : index
    %c0_0 = arith.constant 0 : index
    %0 = vector.load %arg1[%c0, %c0_0] : memref<256x32xf32, #tpu.memory_space<vmem>>, vector<256x32xf32>
    %cst = arith.constant dense<0.000000e+00> : vector<256xf32>
    %1 = vector.multi_reduction <add>, %0, %cst [1] : vector<256x32xf32> to vector<256xf32>
    %2 = vector.shape_cast %1 : vector<256xf32> to vector<256x1xf32>
    %cst_1 = arith.constant 3.200000e+01 : f32
    %3 = vector.broadcast %cst_1 : f32 to vector<256x1xf32>
    %4 = arith.divf %2, %3 : vector<256x1xf32>
    %5 = vector.broadcast %4 : vector<256x1xf32> to vector<256x32xf32>
    %6 = arith.subf %0, %5 : vector<256x32xf32>
    %7 = arith.mulf %6, %6 : vector<256x32xf32>
    %cst_2 = arith.constant dense<0.000000e+00> : vector<256xf32>
    %8 = vector.multi_reduction <add>, %7, %cst_2 [1] : vector<256x32xf32> to vector<256xf32>
    %9 = vector.shape_cast %8 : vector<256xf32> to vector<256x1xf32>
    %cst_3 = arith.constant 3.200000e+01 : f32
    %10 = vector.broadcast %cst_3 : f32 to vector<256x1xf32>
    %11 = arith.divf %9, %10 : vector<256x1xf32>
    %12 = vector.broadcast %4 : vector<256x1xf32> to vector<256x32xf32>
    %13 = arith.subf %0, %12 : vector<256x32xf32>
    %cst_4 = arith.constant 9.99999974E-6 : f32
    %14 = vector.broadcast %cst_4 : f32 to vector<256x1xf32>
    %15 = arith.addf %11, %14 : vector<256x1xf32>
    %16 = math.rsqrt %15 : vector<256x1xf32>
    %17 = vector.broadcast %16 : vector<256x1xf32> to vector<256x32xf32>
    %18 = arith.mulf %13, %17 : vector<256x32xf32>
    %c0_5 = arith.constant 0 : index
    %c0_6 = arith.constant 0 : index
    %19 = vector.load %arg3[%c0_5, %c0_6] : memref<1x32xf32, #tpu.memory_space<vmem>>, vector<1x32xf32>
    %20 = vector.broadcast %19 : vector<1x32xf32> to vector<256x32xf32>
    %21 = arith.mulf %18, %20 : vector<256x32xf32>
    %c0_7 = arith.constant 0 : index
    %c0_8 = arith.constant 0 : index
    %22 = vector.load %arg4[%c0_7, %c0_8] : memref<1x32xf32, #tpu.memory_space<vmem>>, vector<1x32xf32>
    %23 = vector.broadcast %22 : vector<1x32xf32> to vector<256x32xf32>
    %24 = arith.addf %21, %23 : vector<256x32xf32>
    %c0_9 = arith.constant 0 : index
    %c0_10 = arith.constant 0 : index
    %25 = vector.load %arg5[%c0_9, %c0_10] : memref<32x160xf32, #tpu.memory_space<vmem>>, vector<32x160xf32>
    %cst_11 = arith.constant dense<0.000000e+00> : vector<256x160xf32>
    %26 = tpu.matmul %24, %25, %cst_11 {dimension_numbers = #tpu.dot_dimension_numbers<[1], [0], [0], [1], [0, 0, 1, 1], [], []>} : vector<256x32xf32>, vector<32x160xf32>, vector<256x160xf32> -> vector<256x160xf32>
    %c0_12 = arith.constant 0 : index
    %c0_13 = arith.constant 0 : index
    %27 = vector.load %arg6[%c0_12, %c0_13] : memref<1x160xf32, #tpu.memory_space<vmem>>, vector<1x160xf32>
    %28 = vector.broadcast %27 : vector<1x160xf32> to vector<256x160xf32>
    %29 = arith.addf %26, %28 : vector<256x160xf32>
    %c0_14 = arith.constant 0 : index
    %c0_15 = arith.constant 0 : index
    %30 = vector.load %arg2[%c0_14, %c0_15] : memref<256x1xf32, #tpu.memory_space<vmem>>, vector<256x1xf32>
    %31 = vector.extract_strided_slice %29 {offsets = [0, 0], sizes = [256, 32], strides = [1, 1]} : vector<256x160xf32> to vector<256x32xf32>
    %32 = vector.broadcast %30 : vector<256x1xf32> to vector<256x32xf32>
    %33 = arith.mulf %31, %32 : vector<256x32xf32>
    %34 = vector.extract_strided_slice %29 {offsets = [0, 64], sizes = [256, 32], strides = [1, 1]} : vector<256x160xf32> to vector<256x32xf32>
    %35 = arith.negf %34 : vector<256x32xf32>
    %36 = math.exp %35 : vector<256x32xf32>
    %cst_16 = arith.constant 1.000000e+00 : f32
    %37 = vector.broadcast %cst_16 : f32 to vector<256x32xf32>
    %38 = arith.addf %37, %36 : vector<256x32xf32>
    %39 = arith.divf %37, %38 : vector<256x32xf32>
    %40 = arith.mulf %33, %39 : vector<256x32xf32>
    %41 = vector.extract_strided_slice %29 {offsets = [0, 32], sizes = [256, 32], strides = [1, 1]} : vector<256x160xf32> to vector<256x32xf32>
    %42 = vector.broadcast %30 : vector<256x1xf32> to vector<256x32xf32>
    %43 = arith.mulf %41, %42 : vector<256x32xf32>
    %44 = vector.extract_strided_slice %29 {offsets = [0, 96], sizes = [256, 32], strides = [1, 1]} : vector<256x160xf32> to vector<256x32xf32>
    %45 = arith.negf %44 : vector<256x32xf32>
    %46 = math.exp %45 : vector<256x32xf32>
    %cst_17 = arith.constant 1.000000e+00 : f32
    %47 = vector.broadcast %cst_17 : f32 to vector<256x32xf32>
    %48 = arith.addf %47, %46 : vector<256x32xf32>
    %49 = arith.divf %47, %48 : vector<256x32xf32>
    %50 = arith.mulf %43, %49 : vector<256x32xf32>
    %51 = vector.extract_strided_slice %29 {offsets = [0, 128], sizes = [256, 32], strides = [1, 1]} : vector<256x160xf32> to vector<256x32xf32>
    %52 = arith.negf %51 : vector<256x32xf32>
    %53 = math.exp %52 : vector<256x32xf32>
    %cst_18 = arith.constant 1.000000e+00 : f32
    %54 = vector.broadcast %cst_18 : f32 to vector<256x32xf32>
    %55 = arith.addf %54, %53 : vector<256x32xf32>
    %56 = arith.divf %54, %55 : vector<256x32xf32>
    %57 = tpu.transpose %40, [1, 0] : vector<256x32xf32> -> vector<32x256xf32>
    %c0_19 = arith.constant 0 : index
    %c0_20 = arith.constant 0 : index
    %58 = vector.load %arg7[%c0_19, %c0_20] : memref<32x256xf32, #tpu.memory_space<vmem>>, vector<32x256xf32>
    tpu.vector_store %arg7[%c0_19, %c0_20], %57 {strides = array<i32>} : memref<32x256xf32, #tpu.memory_space<vmem>>, vector<32x256xf32>,
    %59 = tpu.transpose %50, [1, 0] : vector<256x32xf32> -> vector<32x256xf32>
    %c0_21 = arith.constant 0 : index
    %c0_22 = arith.constant 0 : index
    %60 = vector.load %arg8[%c0_21, %c0_22] : memref<32x256xf32, #tpu.memory_space<vmem>>, vector<32x256xf32>
    tpu.vector_store %arg8[%c0_21, %c0_22], %59 {strides = array<i32>} : memref<32x256xf32, #tpu.memory_space<vmem>>, vector<32x256xf32>,
    %c0_23 = arith.constant 0 : index
    %c0_24 = arith.constant 0 : index
    %61 = vector.load %arg9[%c0_23, %c0_24] : memref<256x32xf32, #tpu.memory_space<vmem>>, vector<256x32xf32>
    tpu.vector_store %arg9[%c0_23, %c0_24], %56 {strides = array<i32>} : memref<256x32xf32, #tpu.memory_space<vmem>>, vector<256x32xf32>,
    return
  }
  func.func @transform_0(%arg0: i32) -> (i32, i32) {
    %c0_i32 = arith.constant 0 : i32
    %c0_i32_0 = arith.constant 0 : i32
    return %arg0, %c0_i32 : i32, i32
  }
  func.func @transform_1(%arg0: i32) -> (i32, i32) {
    %c0_i32 = arith.constant 0 : i32
    %c0_i32_0 = arith.constant 0 : i32
    return %arg0, %c0_i32 : i32, i32
  }
  func.func @transform_2(%arg0: i32) -> (i32, i32) {
    %c0_i32 = arith.constant 0 : i32
    %c0_i32_0 = arith.constant 0 : i32
    %c0_i32_1 = arith.constant 0 : i32
    return %c0_i32, %c0_i32_0 : i32, i32
  }
  func.func @transform_3(%arg0: i32) -> (i32, i32) {
    %c0_i32 = arith.constant 0 : i32
    %c0_i32_0 = arith.constant 0 : i32
    %c0_i32_1 = arith.constant 0 : i32
    return %c0_i32, %c0_i32_0 : i32, i32
  }
  func.func @transform_4(%arg0: i32) -> (i32, i32) {
    %c0_i32 = arith.constant 0 : i32
    %c0_i32_0 = arith.constant 0 : i32
    %c0_i32_1 = arith.constant 0 : i32
    return %c0_i32, %c0_i32_0 : i32, i32
  }
  func.func @transform_5(%arg0: i32) -> (i32, i32) {
    %c0_i32 = arith.constant 0 : i32
    %c0_i32_0 = arith.constant 0 : i32
    %c0_i32_1 = arith.constant 0 : i32
    return %c0_i32, %c0_i32_0 : i32, i32
  }
  func.func @transform_6(%arg0: i32) -> (i32, i32) {
    %c0_i32 = arith.constant 0 : i32
    %c0_i32_0 = arith.constant 0 : i32
    return %c0_i32, %arg0 : i32, i32
  }
  func.func @transform_7(%arg0: i32) -> (i32, i32) {
    %c0_i32 = arith.constant 0 : i32
    %c0_i32_0 = arith.constant 0 : i32
    return %c0_i32, %arg0 : i32, i32
  }
  func.func @transform_8(%arg0: i32) -> (i32, i32) {
    %c0_i32 = arith.constant 0 : i32
    %c0_i32_0 = arith.constant 0 : i32
    return %arg0, %c0_i32 : i32, i32
  }
}

</mosaic_0001>

<llo_original>
// kernel: tpu_custom_call.1
$region0: #{tpu_custom_call.1}
  #allocation0 [shape = 'u32[]', space=smem, size = 0x4, offset = 0x4, fixed_abs, tag = 'smem constant byte address 0x4 - core index']
  #allocation1 [shape = 'u32[144,128]{1,0:T(1,128)}', space=vmem, size = 0x12000, scoped, tag = 'internal scratch']
  %s0 = inlined_call_operand.vmem [shape: f32[256,32], index: 0, kind: input, shape index: {}]
  %s1 = inlined_call_operand.vmem [shape: f32[256,1], index: 1, kind: input, shape index: {}]
  %s2 = inlined_call_operand.vmem [shape: f32[1,32], index: 2, kind: input, shape index: {}]
  %s3 = inlined_call_operand.vmem [shape: f32[1,32], index: 3, kind: input, shape index: {}]
  %s4 = inlined_call_operand.vmem [shape: f32[32,160], index: 4, kind: input, shape index: {}]
  %s5 = inlined_call_operand.vmem [shape: f32[1,160], index: 5, kind: input, shape index: {}]
  %s6 = inlined_call_operand.hbm [shape: f32[32,256], index: 6, kind: output, shape index: {0}]
  %s7 = inlined_call_operand.hbm [shape: f32[32,256], index: 7, kind: output, shape index: {1}]
  %s8 = inlined_call_operand.vmem [shape: f32[256,32], index: 8, kind: output, shape index: {2}]
  %9 = xla_tuple %s6, %s7, %s8
  %s10 = sld [smem:[#allocation0]]
  $region50: #{tpu_custom_call.1} parent=0
    _
  %s12 = ssub.s32 1, %s10
  %s13 = scalar_select 0, %s12, %s10
  $region1: #{tpu_custom_call.1} parent=0
    #allocation2 [shape = 'u8[32768]{0}', space=vmem, size = 0x8000, scoped, tag = 'output window, operand 0, single buffered']
    #allocation3 [shape = 's32[1]{0}', space=sflag, size = 0x4, scoped, tag = 'scoped memory for tpu_custom_call.1']
    #allocation4 [shape = 'u8[32768]{0}', space=vmem, size = 0x8000, scoped, tag = 'output window, operand 1, single buffered']
    #allocation5 [shape = 's32[1]{0}', space=sflag, size = 0x4, scoped, tag = 'scoped memory for tpu_custom_call.1']
    %14 = vsyncpa [#allocation3], 0
    %15 = vsyncpa [#allocation5], 0
    // Predicated region
    $region2: #{tpu_custom_call.1} parent=1 // pred_check
      _
    $region3: #{tpu_custom_call.1} parent=1 // pred_check_branch
      %17 = sbr.rel (0) target = $region5
    $region4: #{tpu_custom_call.1} parent=1 // pred_region
      _
    $region5: #{tpu_custom_call.1} parent=1 // pred_fallthru
      _
    // Predicated region
    $region6: #{tpu_custom_call.1} parent=1 // pred_check
      _
    $region7: #{tpu_custom_call.1} parent=1 // pred_check_branch
      %19 = sbr.rel (0) target = $region9
    $region8: #{tpu_custom_call.1} parent=1 // pred_region
      _
    $region9: #{tpu_custom_call.1} parent=1 // pred_fallthru
      _
    // Predicated region
    $region10: #{tpu_custom_call.1} parent=1 // pred_check
      _
    $region11: #{tpu_custom_call.1} parent=1 // pred_check_branch
      %21 = sbr.rel (0) target = $region13
    $region12: #{tpu_custom_call.1} parent=1 // pred_region
      _
    $region13: #{tpu_custom_call.1} parent=1 // pred_fallthru
      _
    // Predicated region
    $region14: #{tpu_custom_call.1} parent=1 // pred_check
      _
    $region15: #{tpu_custom_call.1} parent=1 // pred_check_branch
      %23 = sbr.rel (0) target = $region17
    $region16: #{tpu_custom_call.1} parent=1 // pred_region
      _
    $region17: #{tpu_custom_call.1} parent=1 // pred_fallthru
      _
    // Predicated region
    $region18: #{tpu_custom_call.1} parent=1 // pred_check
      _
    $region19: #{tpu_custom_call.1} parent=1 // pred_check_branch
      %25 = sbr.rel (0) target = $region21
    $region20: #{tpu_custom_call.1} parent=1 // pred_region
      _
    $region21: #{tpu_custom_call.1} parent=1 // pred_fallthru
      _
    // Predicated region
    $region22: #{tpu_custom_call.1} parent=1 // pred_check
      _
    $region23: #{tpu_custom_call.1} parent=1 // pred_check_branch
      %27 = sbr.rel (0) target = $region25
    $region24: #{tpu_custom_call.1} parent=1 // pred_region
      _
    $region25: #{tpu_custom_call.1} parent=1 // pred_fallthru
      _
    %v28 = vld [vmem:[%s0] sm:$0xff]
    %v29 = vld [vmem:[%s0 + $0x8] sm:$0xff]
    %v30 = vld [vmem:[%s0 + $0x10] sm:$0xff]
    %v31 = vld [vmem:[%s0 + $0x18] sm:$0xff]
    %v32 = vld [vmem:[%s0 + $0x20] sm:$0xff]
    %v33 = vld [vmem:[%s0 + $0x28] sm:$0xff]
    %v34 = vld [vmem:[%s0 + $0x30] sm:$0xff]
    %v35 = vld [vmem:[%s0 + $0x38] sm:$0xff]
    %v36 = vld [vmem:[%s0 + $0x40] sm:$0xff]
    %v37 = vld [vmem:[%s0 + $0x48] sm:$0xff]
    %v38 = vld [vmem:[%s0 + $0x50] sm:$0xff]
    %v39 = vld [vmem:[%s0 + $0x58] sm:$0xff]
    %v40 = vld [vmem:[%s0 + $0x60] sm:$0xff]
    %v41 = vld [vmem:[%s0 + $0x68] sm:$0xff]
    %v42 = vld [vmem:[%s0 + $0x70] sm:$0xff]
    %v43 = vld [vmem:[%s0 + $0x78] sm:$0xff]
    %v44 = vld [vmem:[%s0 + $0x80] sm:$0xff]
    %v45 = vld [vmem:[%s0 + $0x88] sm:$0xff]
    %v46 = vld [vmem:[%s0 + $0x90] sm:$0xff]
    %v47 = vld [vmem:[%s0 + $0x98] sm:$0xff]
    %v48 = vld [vmem:[%s0 + $0xa0] sm:$0xff]
    %v49 = vld [vmem:[%s0 + $0xa8] sm:$0xff]
    %v50 = vld [vmem:[%s0 + $0xb0] sm:$0xff]
    %v51 = vld [vmem:[%s0 + $0xb8] sm:$0xff]
    %v52 = vld [vmem:[%s0 + $0xc0] sm:$0xff]
    %v53 = vld [vmem:[%s0 + $0xc8] sm:$0xff]
    %v54 = vld [vmem:[%s0 + $0xd0] sm:$0xff]
    %v55 = vld [vmem:[%s0 + $0xd8] sm:$0xff]
    %v56 = vld [vmem:[%s0 + $0xe0] sm:$0xff]
    %v57 = vld [vmem:[%s0 + $0xe8] sm:$0xff]
    %v58 = vld [vmem:[%s0 + $0xf0] sm:$0xff]
    %v59 = vld [vmem:[%s0 + $0xf8] sm:$0xff]
    %vm60 = vcmask 261120
    %v61 = vsel %vm60, %v28, 0.0
    %62 = vadd.xlane.f32.xlu0 %v61
    %v63 = vpop.xlane.xlu0 %62
    %v64 = vsel %vm60, %v29, 0.0
    %65 = vadd.xlane.f32.xlu0 %v64
    %v66 = vpop.xlane.xlu0 %65
    %v67 = vsel %vm60, %v30, 0.0
    %68 = vadd.xlane.f32.xlu0 %v67
    %v69 = vpop.xlane.xlu0 %68
    %v70 = vsel %vm60, %v31, 0.0
    %71 = vadd.xlane.f32.xlu0 %v70
    %v72 = vpop.xlane.xlu0 %71
    %v73 = vsel %vm60, %v32, 0.0
    %74 = vadd.xlane.f32.xlu0 %v73
    %v75 = vpop.xlane.xlu0 %74
    %v76 = vsel %vm60, %v33, 0.0
    %77 = vadd.xlane.f32.xlu0 %v76
    %v78 = vpop.xlane.xlu0 %77
    %v79 = vsel %vm60, %v34, 0.0
    %80 = vadd.xlane.f32.xlu0 %v79
    %v81 = vpop.xlane.xlu0 %80
    %v82 = vsel %vm60, %v35, 0.0
    %83 = vadd.xlane.f32.xlu0 %v82
    %v84 = vpop.xlane.xlu0 %83
    %v85 = vsel %vm60, %v36, 0.0
    %86 = vadd.xlane.f32.xlu0 %v85
    %v87 = vpop.xlane.xlu0 %86
    %v88 = vsel %vm60, %v37, 0.0
    %89 = vadd.xlane.f32.xlu0 %v88
    %v90 = vpop.xlane.xlu0 %89
    %v91 = vsel %vm60, %v38, 0.0
    %92 = vadd.xlane.f32.xlu0 %v91
    %v93 = vpop.xlane.xlu0 %92
    %v94 = vsel %vm60, %v39, 0.0
    %95 = vadd.xlane.f32.xlu0 %v94
    %v96 = vpop.xlane.xlu0 %95
    %v97 = vsel %vm60, %v40, 0.0
    %98 = vadd.xlane.f32.xlu0 %v97
    %v99 = vpop.xlane.xlu0 %98
    %v100 = vsel %vm60, %v41, 0.0
    %101 = vadd.xlane.f32.xlu0 %v100
    %v102 = vpop.xlane.xlu0 %101
    %v103 = vsel %vm60, %v42, 0.0
    %104 = vadd.xlane.f32.xlu0 %v103
    %v105 = vpop.xlane.xlu0 %104
    %v106 = vsel %vm60, %v43, 0.0
    %107 = vadd.xlane.f32.xlu0 %v106
    %v108 = vpop.xlane.xlu0 %107
    %v109 = vsel %vm60, %v44, 0.0
    %110 = vadd.xlane.f32.xlu0 %v109
    %v111 = vpop.xlane.xlu0 %110
    %v112 = vsel %vm60, %v45, 0.0
    %113 = vadd.xlane.f32.xlu0 %v112
    %v114 = vpop.xlane.xlu0 %113
    %v115 = vsel %vm60, %v46, 0.0
    %116 = vadd.xlane.f32.xlu0 %v115
    %v117 = vpop.xlane.xlu0 %116
    %v118 = vsel %vm60, %v47, 0.0
    %119 = vadd.xlane.f32.xlu0 %v118
    %v120 = vpop.xlane.xlu0 %119
    %v121 = vsel %vm60, %v48, 0.0
    %122 = vadd.xlane.f32.xlu0 %v121
    %v123 = vpop.xlane.xlu0 %122
    %v124 = vsel %vm60, %v49, 0.0
    %125 = vadd.xlane.f32.xlu0 %v124
    %v126 = vpop.xlane.xlu0 %125
    %v127 = vsel %vm60, %v50, 0.0
    %128 = vadd.xlane.f32.xlu0 %v127
    %v129 = vpop.xlane.xlu0 %128
    %v130 = vsel %vm60, %v51, 0.0
    %131 = vadd.xlane.f32.xlu0 %v130
    %v132 = vpop.xlane.xlu0 %131
    %v133 = vsel %vm60, %v52, 0.0
    %134 = vadd.xlane.f32.xlu0 %v133
    %v135 = vpop.xlane.xlu0 %134
    %v136 = vsel %vm60, %v53, 0.0
    %137 = vadd.xlane.f32.xlu0 %v136
    %v138 = vpop.xlane.xlu0 %137
    %v139 = vsel %vm60, %v54, 0.0
    %140 = vadd.xlane.f32.xlu0 %v139
    %v141 = vpop.xlane.xlu0 %140
    %v142 = vsel %vm60, %v55, 0.0
    %143 = vadd.xlane.f32.xlu0 %v142
    %v144 = vpop.xlane.xlu0 %143
    %v145 = vsel %vm60, %v56, 0.0
    %146 = vadd.xlane.f32.xlu0 %v145
    %v147 = vpop.xlane.xlu0 %146
    %v148 = vsel %vm60, %v57, 0.0
    %149 = vadd.xlane.f32.xlu0 %v148
    %v150 = vpop.xlane.xlu0 %149
    %v151 = vsel %vm60, %v58, 0.0
    %152 = vadd.xlane.f32.xlu0 %v151
    %v153 = vpop.xlane.xlu0 %152
    %v154 = vsel %vm60, %v59, 0.0
    %155 = vadd.xlane.f32.xlu0 %v154
    %v156 = vpop.xlane.xlu0 %155
    %v157 = vrcp.pop 32.0
    %v158 = vmul.f32 %v63, %v157
    %v159 = vmul.f32 %v66, %v157
    %v160 = vmul.f32 %v69, %v157
    %v161 = vmul.f32 %v72, %v157
    %v162 = vmul.f32 %v75, %v157
    %v163 = vmul.f32 %v78, %v157
    %v164 = vmul.f32 %v81, %v157
    %v165 = vmul.f32 %v84, %v157
    %v166 = vmul.f32 %v87, %v157
    %v167 = vmul.f32 %v90, %v157
    %v168 = vmul.f32 %v93, %v157
    %v169 = vmul.f32 %v96, %v157
    %v170 = vmul.f32 %v99, %v157
    %v171 = vmul.f32 %v102, %v157
    %v172 = vmul.f32 %v105, %v157
    %v173 = vmul.f32 %v108, %v157
    %v174 = vmul.f32 %v111, %v157
    %v175 = vmul.f32 %v114, %v157
    %v176 = vmul.f32 %v117, %v157
    %v177 = vmul.f32 %v120, %v157
    %v178 = vmul.f32 %v123, %v157
    %v179 = vmul.f32 %v126, %v157
    %v180 = vmul.f32 %v129, %v157
    %v181 = vmul.f32 %v132, %v157
    %v182 = vmul.f32 %v135, %v157
    %v183 = vmul.f32 %v138, %v157
    %v184 = vmul.f32 %v141, %v157
    %v185 = vmul.f32 %v144, %v157
    %v186 = vmul.f32 %v147, %v157
    %v187 = vmul.f32 %v150, %v157
    %v188 = vmul.f32 %v153, %v157
    %v189 = vmul.f32 %v156, %v157
    %v190 = vsub.f32 %v28, %v158
    %v191 = vsub.f32 %v29, %v159
    %v192 = vsub.f32 %v30, %v160
    %v193 = vsub.f32 %v31, %v161
    %v194 = vsub.f32 %v32, %v162
    %v195 = vsub.f32 %v33, %v163
    %v196 = vsub.f32 %v34, %v164
    %v197 = vsub.f32 %v35, %v165
    %v198 = vsub.f32 %v36, %v166
    %v199 = vsub.f32 %v37, %v167
    %v200 = vsub.f32 %v38, %v168
    %v201 = vsub.f32 %v39, %v169
    %v202 = vsub.f32 %v40, %v170
    %v203 = vsub.f32 %v41, %v171
    %v204 = vsub.f32 %v42, %v172
    %v205 = vsub.f32 %v43, %v173
    %v206 = vsub.f32 %v44, %v174
    %v207 = vsub.f32 %v45, %v175
    %v208 = vsub.f32 %v46, %v176
    %v209 = vsub.f32 %v47, %v177
    %v210 = vsub.f32 %v48, %v178
    %v211 = vsub.f32 %v49, %v179
    %v212 = vsub.f32 %v50, %v180
    %v213 = vsub.f32 %v51, %v181
    %v214 = vsub.f32 %v52, %v182
    %v215 = vsub.f32 %v53, %v183
    %v216 = vsub.f32 %v54, %v184
    %v217 = vsub.f32 %v55, %v185
    %v218 = vsub.f32 %v56, %v186
    %v219 = vsub.f32 %v57, %v187
    %v220 = vsub.f32 %v58, %v188
    %v221 = vsub.f32 %v59, %v189
    %v222 = vmul.f32 %v190, %v190
    %v223 = vmul.f32 %v191, %v191
    %v224 = vmul.f32 %v192, %v192
    %v225 = vmul.f32 %v193, %v193
    %v226 = vmul.f32 %v194, %v194
    %v227 = vmul.f32 %v195, %v195
    %v228 = vmul.f32 %v196, %v196
    %v229 = vmul.f32 %v197, %v197
    %v230 = vmul.f32 %v198, %v198
    %v231 = vmul.f32 %v199, %v199
    %v232 = vmul.f32 %v200, %v200
    %v233 = vmul.f32 %v201, %v201
    %v234 = vmul.f32 %v202, %v202
    %v235 = vmul.f32 %v203, %v203
    %v236 = vmul.f32 %v204, %v204
    %v237 = vmul.f32 %v205, %v205
    %v238 = vmul.f32 %v206, %v206
    %v239 = vmul.f32 %v207, %v207
    %v240 = vmul.f32 %v208, %v208
    %v241 = vmul.f32 %v209, %v209
    %v242 = vmul.f32 %v210, %v210
    %v243 = vmul.f32 %v211, %v211
    %v244 = vmul.f32 %v212, %v212
    %v245 = vmul.f32 %v213, %v213
    %v246 = vmul.f32 %v214, %v214
    %v247 = vmul.f32 %v215, %v215
    %v248 = vmul.f32 %v216, %v216
    %v249 = vmul.f32 %v217, %v217
    %v250 = vmul.f32 %v218, %v218
    %v251 = vmul.f32 %v219, %v219
    %v252 = vmul.f32 %v220, %v220
    %v253 = vmul.f32 %v221, %v221
    %v254 = vsel %vm60, %v222, 0.0
    %255 = vadd.xlane.f32.xlu0 %v254
    %v256 = vpop.xlane.xlu0 %255
    %v257 = vsel %vm60, %v223, 0.0
    %258 = vadd.xlane.f32.xlu0 %v257
    %v259 = vpop.xlane.xlu0 %258
    %v260 = vsel %vm60, %v224, 0.0
    %261 = vadd.xlane.f32.xlu0 %v260
    %v262 = vpop.xlane.xlu0 %261
    %v263 = vsel %vm60, %v225, 0.0
    %264 = vadd.xlane.f32.xlu0 %v263
    %v265 = vpop.xlane.xlu0 %264
    %v266 = vsel %vm60, %v226, 0.0
    %267 = vadd.xlane.f32.xlu0 %v266
    %v268 = vpop.xlane.xlu0 %267
    %v269 = vsel %vm60, %v227, 0.0
    %270 = vadd.xlane.f32.xlu0 %v269
    %v271 = vpop.xlane.xlu0 %270
    %v272 = vsel %vm60, %v228, 0.0
    %273 = vadd.xlane.f32.xlu0 %v272
    %v274 = vpop.xlane.xlu0 %273
    %v275 = vsel %vm60, %v229, 0.0
    %276 = vadd.xlane.f32.xlu0 %v275
    %v277 = vpop.xlane.xlu0 %276
    %v278 = vsel %vm60, %v230, 0.0
    %279 = vadd.xlane.f32.xlu0 %v278
    %v280 = vpop.xlane.xlu0 %279
    %v281 = vsel %vm60, %v231, 0.0
    %282 = vadd.xlane.f32.xlu0 %v281
    %v283 = vpop.xlane.xlu0 %282
    %v284 = vsel %vm60, %v232, 0.0
    %285 = vadd.xlane.f32.xlu0 %v284
    %v286 = vpop.xlane.xlu0 %285
    %v287 = vsel %vm60, %v233, 0.0
    %288 = vadd.xlane.f32.xlu0 %v287
    %v289 = vpop.xlane.xlu0 %288
    %v290 = vsel %vm60, %v234, 0.0
    %291 = vadd.xlane.f32.xlu0 %v290
    %v292 = vpop.xlane.xlu0 %291
    %v293 = vsel %vm60, %v235, 0.0
    %294 = vadd.xlane.f32.xlu0 %v293
    %v295 = vpop.xlane.xlu0 %294
    %v296 = vsel %vm60, %v236, 0.0
    %297 = vadd.xlane.f32.xlu0 %v296
    %v298 = vpop.xlane.xlu0 %297
    %v299 = vsel %vm60, %v237, 0.0
    %300 = vadd.xlane.f32.xlu0 %v299
    %v301 = vpop.xlane.xlu0 %300
    %v302 = vsel %vm60, %v238, 0.0
    %303 = vadd.xlane.f32.xlu0 %v302
    %v304 = vpop.xlane.xlu0 %303
    %v305 = vsel %vm60, %v239, 0.0
    %306 = vadd.xlane.f32.xlu0 %v305
    %v307 = vpop.xlane.xlu0 %306
    %v308 = vsel %vm60, %v240, 0.0
    %309 = vadd.xlane.f32.xlu0 %v308
    %v310 = vpop.xlane.xlu0 %309
    %v311 = vsel %vm60, %v241, 0.0
    %312 = vadd.xlane.f32.xlu0 %v311
    %v313 = vpop.xlane.xlu0 %312
    %v314 = vsel %vm60, %v242, 0.0
    %315 = vadd.xlane.f32.xlu0 %v314
    %v316 = vpop.xlane.xlu0 %315
    %v317 = vsel %vm60, %v243, 0.0
    %318 = vadd.xlane.f32.xlu0 %v317
    %v319 = vpop.xlane.xlu0 %318
    %v320 = vsel %vm60, %v244, 0.0
    %321 = vadd.xlane.f32.xlu0 %v320
    %v322 = vpop.xlane.xlu0 %321
    %v323 = vsel %vm60, %v245, 0.0
    %324 = vadd.xlane.f32.xlu0 %v323
    %v325 = vpop.xlane.xlu0 %324
    %v326 = vsel %vm60, %v246, 0.0
    %327 = vadd.xlane.f32.xlu0 %v326
    %v328 = vpop.xlane.xlu0 %327
    %v329 = vsel %vm60, %v247, 0.0
    %330 = vadd.xlane.f32.xlu0 %v329
    %v331 = vpop.xlane.xlu0 %330
    %v332 = vsel %vm60, %v248, 0.0
    %333 = vadd.xlane.f32.xlu0 %v332
    %v334 = vpop.xlane.xlu0 %333
    %v335 = vsel %vm60, %v249, 0.0
    %336 = vadd.xlane.f32.xlu0 %v335
    %v337 = vpop.xlane.xlu0 %336
    %v338 = vsel %vm60, %v250, 0.0
    %339 = vadd.xlane.f32.xlu0 %v338
    %v340 = vpop.xlane.xlu0 %339
    %v341 = vsel %vm60, %v251, 0.0
    %342 = vadd.xlane.f32.xlu0 %v341
    %v343 = vpop.xlane.xlu0 %342
    %v344 = vsel %vm60, %v252, 0.0
    %345 = vadd.xlane.f32.xlu0 %v344
    %v346 = vpop.xlane.xlu0 %345
    %v347 = vsel %vm60, %v253, 0.0
    %348 = vadd.xlane.f32.xlu0 %v347
    %v349 = vpop.xlane.xlu0 %348
    %v350 = vmul.f32 %v256, %v157
    %v351 = vmul.f32 %v259, %v157
    %v352 = vmul.f32 %v262, %v157
    %v353 = vmul.f32 %v265, %v157
    %v354 = vmul.f32 %v268, %v157
    %v355 = vmul.f32 %v271, %v157
    %v356 = vmul.f32 %v274, %v157
    %v357 = vmul.f32 %v277, %v157
    %v358 = vmul.f32 %v280, %v157
    %v359 = vmul.f32 %v283, %v157
    %v360 = vmul.f32 %v286, %v157
    %v361 = vmul.f32 %v289, %v157
    %v362 = vmul.f32 %v292, %v157
    %v363 = vmul.f32 %v295, %v157
    %v364 = vmul.f32 %v298, %v157
    %v365 = vmul.f32 %v301, %v157
    %v366 = vmul.f32 %v304, %v157
    %v367 = vmul.f32 %v307, %v157
    %v368 = vmul.f32 %v310, %v157
    %v369 = vmul.f32 %v313, %v157
    %v370 = vmul.f32 %v316, %v157
    %v371 = vmul.f32 %v319, %v157
    %v372 = vmul.f32 %v322, %v157
    %v373 = vmul.f32 %v325, %v157
    %v374 = vmul.f32 %v328, %v157
    %v375 = vmul.f32 %v331, %v157
    %v376 = vmul.f32 %v334, %v157
    %v377 = vmul.f32 %v337, %v157
    %v378 = vmul.f32 %v340, %v157
    %v379 = vmul.f32 %v343, %v157
    %v380 = vmul.f32 %v346, %v157
    %v381 = vmul.f32 %v349, %v157
    %v382 = vadd.f32 %v350, 1e-05
    %v383 = vadd.f32 %v351, 1e-05
    %v384 = vadd.f32 %v352, 1e-05
    %v385 = vadd.f32 %v353, 1e-05
    %v386 = vadd.f32 %v354, 1e-05
    %v387 = vadd.f32 %v355, 1e-05
    %v388 = vadd.f32 %v356, 1e-05
    %v389 = vadd.f32 %v357, 1e-05
    %v390 = vadd.f32 %v358, 1e-05
    %v391 = vadd.f32 %v359, 1e-05
    %v392 = vadd.f32 %v360, 1e-05
    %v393 = vadd.f32 %v361, 1e-05
    %v394 = vadd.f32 %v362, 1e-05
    %v395 = vadd.f32 %v363, 1e-05
    %v396 = vadd.f32 %v364, 1e-05
    %v397 = vadd.f32 %v365, 1e-05
    %v398 = vadd.f32 %v366, 1e-05
    %v399 = vadd.f32 %v367, 1e-05
    %v400 = vadd.f32 %v368, 1e-05
    %v401 = vadd.f32 %v369, 1e-05
    %v402 = vadd.f32 %v370, 1e-05
    %v403 = vadd.f32 %v371, 1e-05
    %v404 = vadd.f32 %v372, 1e-05
    %v405 = vadd.f32 %v373, 1e-05
    %v406 = vadd.f32 %v374, 1e-05
    %v407 = vadd.f32 %v375, 1e-05
    %v408 = vadd.f32 %v376, 1e-05
    %v409 = vadd.f32 %v377, 1e-05
    %v410 = vadd.f32 %v378, 1e-05
    %v411 = vadd.f32 %v379, 1e-05
    %v412 = vadd.f32 %v380, 1e-05
    %v413 = vadd.f32 %v381, 1e-05
    %v414 = vrsqrt.pop %v382
    %v415 = vrsqrt.pop %v383
    %v416 = vrsqrt.pop %v384
    %v417 = vrsqrt.pop %v385
    %v418 = vrsqrt.pop %v386
    %v419 = vrsqrt.pop %v387
    %v420 = vrsqrt.pop %v388
    %v421 = vrsqrt.pop %v389
    %v422 = vrsqrt.pop %v390
    %v423 = vrsqrt.pop %v391
    %v424 = vrsqrt.pop %v392
    %v425 = vrsqrt.pop %v393
    %v426 = vrsqrt.pop %v394
    %v427 = vrsqrt.pop %v395
    %v428 = vrsqrt.pop %v396
    %v429 = vrsqrt.pop %v397
    %v430 = vrsqrt.pop %v398
    %v431 = vrsqrt.pop %v399
    %v432 = vrsqrt.pop %v400
    %v433 = vrsqrt.pop %v401
    %v434 = vrsqrt.pop %v402
    %v435 = vrsqrt.pop %v403
    %v436 = vrsqrt.pop %v404
    %v437 = vrsqrt.pop %v405
    %v438 = vrsqrt.pop %v406
    %v439 = vrsqrt.pop %v407
    %v440 = vrsqrt.pop %v408
    %v441 = vrsqrt.pop %v409
    %v442 = vrsqrt.pop %v410
    %v443 = vrsqrt.pop %v411
    %v444 = vrsqrt.pop %v412
    %v445 = vrsqrt.pop %v413
    %v446 = vmul.f32 %v190, %v414
    %v447 = vmul.f32 %v191, %v415
    %v448 = vmul.f32 %v192, %v416
    %v449 = vmul.f32 %v193, %v417
    %v450 = vmul.f32 %v194, %v418
    %v451 = vmul.f32 %v195, %v419
    %v452 = vmul.f32 %v196, %v420
    %v453 = vmul.f32 %v197, %v421
    %v454 = vmul.f32 %v198, %v422
    %v455 = vmul.f32 %v199, %v423
    %v456 = vmul.f32 %v200, %v424
    %v457 = vmul.f32 %v201, %v425
    %v458 = vmul.f32 %v202, %v426
    %v459 = vmul.f32 %v203, %v427
    %v460 = vmul.f32 %v204, %v428
    %v461 = vmul.f32 %v205, %v429
    %v462 = vmul.f32 %v206, %v430
    %v463 = vmul.f32 %v207, %v431
    %v464 = vmul.f32 %v208, %v432
    %v465 = vmul.f32 %v209, %v433
    %v466 = vmul.f32 %v210, %v434
    %v467 = vmul.f32 %v211, %v435
    %v468 = vmul.f32 %v212, %v436
    %v469 = vmul.f32 %v213, %v437
    %v470 = vmul.f32 %v214, %v438
    %v471 = vmul.f32 %v215, %v439
    %v472 = vmul.f32 %v216, %v440
    %v473 = vmul.f32 %v217, %v441
    %v474 = vmul.f32 %v218, %v442
    %v475 = vmul.f32 %v219, %v443
    %v476 = vmul.f32 %v220, %v444
    %v477 = vmul.f32 %v221, %v445
    %v478 = vld [vmem:[%s2] sm:$0x1]
    %v480 = vlaneseq
    %v481 = vshrl.u32 %v480, 7
    %v482 = vsub.s32 0, %v481
    %v483 = vrot.slane %v478, %v482
    %v485 = vmul.f32 %v446, %v483
    %v486 = vmul.f32 %v447, %v483
    %v487 = vmul.f32 %v448, %v483
    %v488 = vmul.f32 %v449, %v483
    %v489 = vmul.f32 %v450, %v483
    %v490 = vmul.f32 %v451, %v483
    %v491 = vmul.f32 %v452, %v483
    %v492 = vmul.f32 %v453, %v483
    %v493 = vmul.f32 %v454, %v483
    %v494 = vmul.f32 %v455, %v483
    %v495 = vmul.f32 %v456, %v483
    %v496 = vmul.f32 %v457, %v483
    %v497 = vmul.f32 %v458, %v483
    %v498 = vmul.f32 %v459, %v483
    %v499 = vmul.f32 %v460, %v483
    %v500 = vmul.f32 %v461, %v483
    %v501 = vmul.f32 %v462, %v483
    %v502 = vmul.f32 %v463, %v483
    %v503 = vmul.f32 %v464, %v483
    %v504 = vmul.f32 %v465, %v483
    %v505 = vmul.f32 %v466, %v483
    %v506 = vmul.f32 %v467, %v483
    %v507 = vmul.f32 %v468, %v483
    %v508 = vmul.f32 %v469, %v483
    %v509 = vmul.f32 %v470, %v483
    %v510 = vmul.f32 %v471, %v483
    %v511 = vmul.f32 %v472, %v483
    %v512 = vmul.f32 %v473, %v483
    %v513 = vmul.f32 %v474, %v483
    %v514 = vmul.f32 %v475, %v483
    %v515 = vmul.f32 %v476, %v483
    %v516 = vmul.f32 %v477, %v483
    %v517 = vld [vmem:[%s3] sm:$0x1]
    %v519 = vlaneseq
    %v520 = vshrl.u32 %v519, 7
    %v521 = vsub.s32 0, %v520
    %v522 = vrot.slane %v517, %v521
    %v524 = vadd.f32 %v485, %v522
    %v525 = vadd.f32 %v486, %v522
    %v526 = vadd.f32 %v487, %v522
    %v527 = vadd.f32 %v488, %v522
    %v528 = vadd.f32 %v489, %v522
    %v529 = vadd.f32 %v490, %v522
    %v530 = vadd.f32 %v491, %v522
    %v531 = vadd.f32 %v492, %v522
    %v532 = vadd.f32 %v493, %v522
    %v533 = vadd.f32 %v494, %v522
    %v534 = vadd.f32 %v495, %v522
    %v535 = vadd.f32 %v496, %v522
    %v536 = vadd.f32 %v497, %v522
    %v537 = vadd.f32 %v498, %v522
    %v538 = vadd.f32 %v499, %v522
    %v539 = vadd.f32 %v500, %v522
    %v540 = vadd.f32 %v501, %v522
    %v541 = vadd.f32 %v502, %v522
    %v542 = vadd.f32 %v503, %v522
    %v543 = vadd.f32 %v504, %v522
    %v544 = vadd.f32 %v505, %v522
    %v545 = vadd.f32 %v506, %v522
    %v546 = vadd.f32 %v507, %v522
    %v547 = vadd.f32 %v508, %v522
    %v548 = vadd.f32 %v509, %v522
    %v549 = vadd.f32 %v510, %v522
    %v550 = vadd.f32 %v511, %v522
    %v551 = vadd.f32 %v512, %v522
    %v552 = vadd.f32 %v513, %v522
    %v553 = vadd.f32 %v514, %v522
    %v554 = vadd.f32 %v515, %v522
    %v555 = vadd.f32 %v516, %v522
    %v556 = vld [vmem:[%s4] sm:$0xff]
    %v557 = vld [vmem:[%s4 + $0x8] sm:$0xff]
    %v558 = vld [vmem:[%s4 + $0x10] sm:$0xff]
    %v559 = vld [vmem:[%s4 + $0x18] sm:$0xff]
    %v560 = vld [vmem:[%s4 + $0x20] sm:$0xff]
    %v561 = vld [vmem:[%s4 + $0x28] sm:$0xff]
    %v562 = vld [vmem:[%s4 + $0x30] sm:$0xff]
    %v563 = vld [vmem:[%s4 + $0x38] sm:$0xff]
    %v564 = vld [vmem:[%s5] sm:$0x3]
    %v566 = vlaneseq
    %v567 = vshrl.u32 %v566, 7
    %v568 = vsub.s32 0, %v567
    %v569 = vrot.slane %v564, %v568
    %v570 = vlaneseq
    %v571 = vshrl.u32 %v570, 7
    %v572 = vsub.s32 1, %v571
    %v573 = vrot.slane %v564, %v572
    %v577 = vsel %vm60, %v524, 0
    %v580 = vsel %vm60, %v525, 0
    %v583 = vsel %vm60, %v526, 0
    %v586 = vsel %vm60, %v527, 0
    %v589 = vsel %vm60, %v528, 0
    %v592 = vsel %vm60, %v529, 0
    %v595 = vsel %vm60, %v530, 0
    %v598 = vsel %vm60, %v531, 0
    %v601 = vsel %vm60, %v532, 0
    %v604 = vsel %vm60, %v533, 0
    %v607 = vsel %vm60, %v534, 0
    %v610 = vsel %vm60, %v535, 0
    %v613 = vsel %vm60, %v536, 0
    %v616 = vsel %vm60, %v537, 0
    %v619 = vsel %vm60, %v538, 0
    %v622 = vsel %vm60, %v539, 0
    %v625 = vsel %vm60, %v540, 0
    %v628 = vsel %vm60, %v541, 0
    %v631 = vsel %vm60, %v542, 0
    %v634 = vsel %vm60, %v543, 0
    %v637 = vsel %vm60, %v544, 0
    %v640 = vsel %vm60, %v545, 0
    %v643 = vsel %vm60, %v546, 0
    %v646 = vsel %vm60, %v547, 0
    %v649 = vsel %vm60, %v548, 0
    %v652 = vsel %vm60, %v549, 0
    %v655 = vsel %vm60, %v550, 0
    %v658 = vsel %vm60, %v551, 0
    %v661 = vsel %vm60, %v552, 0
    %v664 = vsel %vm60, %v553, 0
    %v667 = vsel %vm60, %v554, 0
    %v670 = vsel %vm60, %v555, 0
    %672 = vmatprep.subr.mxu0 %v557
    %673 = vmatpush1.msra.mxu0 %v556
    %674 = vmatprep.subr.mxu0 %v559
    %675 = vmatpush1.msra.mxu0 %v558
    %676 = vmatprep.subr.mxu0 %v561
    %677 = vmatpush1.msra.mxu0 %v560
    %678 = vmatprep.subr.mxu0 %v563
    %679 = vmatpush1.msra.mxu0 %v562
    %680 = vmatprep.subr.mxu0 0.0
    %681 = vmatpush1.msra.mxu0 0.0
    %682 = vmatprep.subr.mxu0 0.0
    %683 = vmatpush1.msra.mxu0 0.0
    %684 = vmatprep.subr.mxu0 0.0
    %685 = vmatpush1.msra.mxu0 0.0
    %686 = vmatprep.subr.mxu0 0.0
    %687 = vmatpush1.msra.mxu0 0.0
    %688 = vmatprep.subr.mxu0 0.0
    %689 = vmatpush1.msra.mxu0 0.0
    %690 = vmatprep.subr.mxu0 0.0
    %691 = vmatpush1.msra.mxu0 0.0
    %692 = vmatprep.subr.mxu0 0.0
    %693 = vmatpush1.msra.mxu0 0.0
    %694 = vmatprep.subr.mxu0 0.0
    %695 = vmatpush1.msra.mxu0 0.0
    %696 = vmatprep.subr.mxu0 0.0
    %697 = vmatpush1.msra.mxu0 0.0
    %698 = vmatprep.subr.mxu0 0.0
    %699 = vmatpush1.msra.mxu0 0.0
    %700 = vmatprep.subr.mxu0 0.0
    %701 = vmatpush1.msra.mxu0 0.0
    %702 = vmatprep.subr.mxu0 0.0
    %703 = vmatpush1.msra.mxu0 0.0
    %704 = vmatprep.subr.mxu0 0.0
    %705 = vmatpush1.msra.mxu0 0.0
    %706 = vmatprep.subr.mxu0 0.0
    %707 = vmatpush1.msra.mxu0 0.0
    %708 = vmatprep.subr.mxu0 0.0
    %709 = vmatpush1.msra.mxu0 0.0
    %710 = vmatprep.subr.mxu0 0.0
    %711 = vmatpush1.msra.mxu0 0.0
    %712 = vmatprep.subr.mxu0 0.0
    %713 = vmatpush1.msra.mxu0 0.0
    %714 = vmatprep.subr.mxu0 0.0
    %715 = vmatpush1.msra.mxu0 0.0
    %716 = vmatprep.subr.mxu0 0.0
    %717 = vmatpush1.msra.mxu0 0.0
    %718 = vmatprep.subr.mxu0 0.0
    %719 = vmatpush1.msra.mxu0 0.0
    %720 = vmatprep.subr.mxu0 0.0
    %721 = vmatpush1.msra.mxu0 0.0
    %722 = vmatprep.subr.mxu0 0.0
    %723 = vmatpush1.msra.mxu0 0.0
    %724 = vmatprep.subr.mxu0 0.0
    %725 = vmatpush1.msra.mxu0 0.0
    %726 = vmatprep.subr.mxu0 0.0
    %727 = vmatpush1.msra.mxu0 0.0
    %728 = vmatprep.subr.mxu0 0.0
    %729 = vmatpush1.msra.mxu0 0.0
    %730 = vmatprep.subr.mxu0 0.0
    %731 = vmatpush1.msra.mxu0 0.0
    %732 = vmatprep.subr.mxu0 0.0
    %733 = vmatpush1.msra.mxu0 0.0
    %734 = vmatprep.subr.mxu0 0.0
    %735 = vmatpush1.msra.mxu0 0.0
    %736 = vmatprep.mubr.f32.mxu0 0.0
    %737 = vmatmul.mubr.f32.gmra.mrb[0].mxu0 %v577
    %v738 = vpop.f32.mrb[0].mxu0
    %v739 = vadd.f32 %v569, %v738
    %v740 = vpop.f32.mrb[0].mxu0
    %v741 = vadd.f32 %v573, %v740
    %742 = vmatprep.mubr.f32.mxu0 0.0
    %743 = vmatmul.mubr.f32.gmra.mrb[0].mxu0 %v580
    %v744 = vpop.f32.mrb[0].mxu0
    %v745 = vadd.f32 %v569, %v744
    %v746 = vpop.f32.mrb[0].mxu0
    %v747 = vadd.f32 %v573, %v746
    %748 = vmatprep.mubr.f32.mxu0 0.0
    %749 = vmatmul.mubr.f32.gmra.mrb[0].mxu0 %v583
    %v750 = vpop.f32.mrb[0].mxu0
    %v751 = vadd.f32 %v569, %v750
    %v752 = vpop.f32.mrb[0].mxu0
    %v753 = vadd.f32 %v573, %v752
    %754 = vmatprep.mubr.f32.mxu0 0.0
    %755 = vmatmul.mubr.f32.gmra.mrb[0].mxu0 %v586
    %v756 = vpop.f32.mrb[0].mxu0
    %v757 = vadd.f32 %v569, %v756
    %v758 = vpop.f32.mrb[0].mxu0
    %v759 = vadd.f32 %v573, %v758
    %760 = vmatprep.mubr.f32.mxu0 0.0
    %761 = vmatmul.mubr.f32.gmra.mrb[0].mxu0 %v589
    %v762 = vpop.f32.mrb[0].mxu0
    %v763 = vadd.f32 %v569, %v762
    %v764 = vpop.f32.mrb[0].mxu0
    %v765 = vadd.f32 %v573, %v764
    %766 = vmatprep.mubr.f32.mxu0 0.0
    %767 = vmatmul.mubr.f32.gmra.mrb[0].mxu0 %v592
    %v768 = vpop.f32.mrb[0].mxu0
    %v769 = vadd.f32 %v569, %v768
    %v770 = vpop.f32.mrb[0].mxu0
    %v771 = vadd.f32 %v573, %v770
    %772 = vmatprep.mubr.f32.mxu0 0.0
    %773 = vmatmul.mubr.f32.gmra.mrb[0].mxu0 %v595
    %v774 = vpop.f32.mrb[0].mxu0
    %v775 = vadd.f32 %v569, %v774
    %v776 = vpop.f32.mrb[0].mxu0
    %v777 = vadd.f32 %v573, %v776
    %778 = vmatprep.mubr.f32.mxu0 0.0
    %779 = vmatmul.mubr.f32.gmra.mrb[0].mxu0 %v598
    %v780 = vpop.f32.mrb[0].mxu0
    %v781 = vadd.f32 %v569, %v780
    %v782 = vpop.f32.mrb[0].mxu0
    %v783 = vadd.f32 %v573, %v782
    %784 = vmatprep.mubr.f32.mxu0 0.0
    %785 = vmatmul.mubr.f32.gmra.mrb[0].mxu0 %v601
    %v786 = vpop.f32.mrb[0].mxu0
    %v787 = vadd.f32 %v569, %v786
    %v788 = vpop.f32.mrb[0].mxu0
    %v789 = vadd.f32 %v573, %v788
    %790 = vmatprep.mubr.f32.mxu0 0.0
    %791 = vmatmul.mubr.f32.gmra.mrb[0].mxu0 %v604
    %v792 = vpop.f32.mrb[0].mxu0
    %v793 = vadd.f32 %v569, %v792
    %v794 = vpop.f32.mrb[0].mxu0
    %v795 = vadd.f32 %v573, %v794
    %796 = vmatprep.mubr.f32.mxu0 0.0
    %797 = vmatmul.mubr.f32.gmra.mrb[0].mxu0 %v607
    %v798 = vpop.f32.mrb[0].mxu0
    %v799 = vadd.f32 %v569, %v798
    %v800 = vpop.f32.mrb[0].mxu0
    %v801 = vadd.f32 %v573, %v800
    %802 = vmatprep.mubr.f32.mxu0 0.0
    %803 = vmatmul.mubr.f32.gmra.mrb[0].mxu0 %v610
    %v804 = vpop.f32.mrb[0].mxu0
    %v805 = vadd.f32 %v569, %v804
    %v806 = vpop.f32.mrb[0].mxu0
    %v807 = vadd.f32 %v573, %v806
    %808 = vmatprep.mubr.f32.mxu0 0.0
    %809 = vmatmul.mubr.f32.gmra.mrb[0].mxu0 %v613
    %v810 = vpop.f32.mrb[0].mxu0
    %v811 = vadd.f32 %v569, %v810
    %v812 = vpop.f32.mrb[0].mxu0
    %v813 = vadd.f32 %v573, %v812
    %814 = vmatprep.mubr.f32.mxu0 0.0
    %815 = vmatmul.mubr.f32.gmra.mrb[0].mxu0 %v616
    %v816 = vpop.f32.mrb[0].mxu0
    %v817 = vadd.f32 %v569, %v816
    %v818 = vpop.f32.mrb[0].mxu0
    %v819 = vadd.f32 %v573, %v818
    %820 = vmatprep.mubr.f32.mxu0 0.0
    %821 = vmatmul.mubr.f32.gmra.mrb[0].mxu0 %v619
    %v822 = vpop.f32.mrb[0].mxu0
    %v823 = vadd.f32 %v569, %v822
    %v824 = vpop.f32.mrb[0].mxu0
    %v825 = vadd.f32 %v573, %v824
    %826 = vmatprep.mubr.f32.mxu0 0.0
    %827 = vmatmul.mubr.f32.gmra.mrb[0].mxu0 %v622
    %v828 = vpop.f32.mrb[0].mxu0
    %v829 = vadd.f32 %v569, %v828
    %v830 = vpop.f32.mrb[0].mxu0
    %v831 = vadd.f32 %v573, %v830
    %832 = vmatprep.mubr.f32.mxu0 0.0
    %833 = vmatmul.mubr.f32.gmra.mrb[0].mxu0 %v625
    %v834 = vpop.f32.mrb[0].mxu0
    %v835 = vadd.f32 %v569, %v834
    %v836 = vpop.f32.mrb[0].mxu0
    %v837 = vadd.f32 %v573, %v836
    %838 = vmatprep.mubr.f32.mxu0 0.0
    %839 = vmatmul.mubr.f32.gmra.mrb[0].mxu0 %v628
    %v840 = vpop.f32.mrb[0].mxu0
    %v841 = vadd.f32 %v569, %v840
    %v842 = vpop.f32.mrb[0].mxu0
    %v843 = vadd.f32 %v573, %v842
    %844 = vmatprep.mubr.f32.mxu0 0.0
    %845 = vmatmul.mubr.f32.gmra.mrb[0].mxu0 %v631
    %v846 = vpop.f32.mrb[0].mxu0
    %v847 = vadd.f32 %v569, %v846
    %v848 = vpop.f32.mrb[0].mxu0
    %v849 = vadd.f32 %v573, %v848
    %850 = vmatprep.mubr.f32.mxu0 0.0
    %851 = vmatmul.mubr.f32.gmra.mrb[0].mxu0 %v634
    %v852 = vpop.f32.mrb[0].mxu0
    %v853 = vadd.f32 %v569, %v852
    %v854 = vpop.f32.mrb[0].mxu0
    %v855 = vadd.f32 %v573, %v854
    %856 = vmatprep.mubr.f32.mxu0 0.0
    %857 = vmatmul.mubr.f32.gmra.mrb[0].mxu0 %v637
    %v858 = vpop.f32.mrb[0].mxu0
    %v859 = vadd.f32 %v569, %v858
    %v860 = vpop.f32.mrb[0].mxu0
    %v861 = vadd.f32 %v573, %v860
    %862 = vmatprep.mubr.f32.mxu0 0.0
    %863 = vmatmul.mubr.f32.gmra.mrb[0].mxu0 %v640
    %v864 = vpop.f32.mrb[0].mxu0
    %v865 = vadd.f32 %v569, %v864
    %v866 = vpop.f32.mrb[0].mxu0
    %v867 = vadd.f32 %v573, %v866
    %868 = vmatprep.mubr.f32.mxu0 0.0
    %869 = vmatmul.mubr.f32.gmra.mrb[0].mxu0 %v643
    %v870 = vpop.f32.mrb[0].mxu0
    %v871 = vadd.f32 %v569, %v870
    %v872 = vpop.f32.mrb[0].mxu0
    %v873 = vadd.f32 %v573, %v872
    %874 = vmatprep.mubr.f32.mxu0 0.0
    %875 = vmatmul.mubr.f32.gmra.mrb[0].mxu0 %v646
    %v876 = vpop.f32.mrb[0].mxu0
    %v877 = vadd.f32 %v569, %v876
    %v878 = vpop.f32.mrb[0].mxu0
    %v879 = vadd.f32 %v573, %v878
    %880 = vmatprep.mubr.f32.mxu0 0.0
    %881 = vmatmul.mubr.f32.gmra.mrb[0].mxu0 %v649
    %v882 = vpop.f32.mrb[0].mxu0
    %v883 = vadd.f32 %v569, %v882
    %v884 = vpop.f32.mrb[0].mxu0
    %v885 = vadd.f32 %v573, %v884
    %886 = vmatprep.mubr.f32.mxu0 0.0
    %887 = vmatmul.mubr.f32.gmra.mrb[0].mxu0 %v652
    %v888 = vpop.f32.mrb[0].mxu0
    %v889 = vadd.f32 %v569, %v888
    %v890 = vpop.f32.mrb[0].mxu0
    %v891 = vadd.f32 %v573, %v890
    %892 = vmatprep.mubr.f32.mxu0 0.0
    %893 = vmatmul.mubr.f32.gmra.mrb[0].mxu0 %v655
    %v894 = vpop.f32.mrb[0].mxu0
    %v895 = vadd.f32 %v569, %v894
    %v896 = vpop.f32.mrb[0].mxu0
    %v897 = vadd.f32 %v573, %v896
    %898 = vmatprep.mubr.f32.mxu0 0.0
    %899 = vmatmul.mubr.f32.gmra.mrb[0].mxu0 %v658
    %v900 = vpop.f32.mrb[0].mxu0
    %v901 = vadd.f32 %v569, %v900
    %v902 = vpop.f32.mrb[0].mxu0
    %v903 = vadd.f32 %v573, %v902
    %904 = vmatprep.mubr.f32.mxu0 0.0
    %905 = vmatmul.mubr.f32.gmra.mrb[0].mxu0 %v661
    %v906 = vpop.f32.mrb[0].mxu0
    %v907 = vadd.f32 %v569, %v906
    %v908 = vpop.f32.mrb[0].mxu0
    %v909 = vadd.f32 %v573, %v908
    %910 = vmatprep.mubr.f32.mxu0 0.0
    %911 = vmatmul.mubr.f32.gmra.mrb[0].mxu0 %v664
    %v912 = vpop.f32.mrb[0].mxu0
    %v913 = vadd.f32 %v569, %v912
    %v914 = vpop.f32.mrb[0].mxu0
    %v915 = vadd.f32 %v573, %v914
    %916 = vmatprep.mubr.f32.mxu0 0.0
    %917 = vmatmul.mubr.f32.gmra.mrb[0].mxu0 %v667
    %v918 = vpop.f32.mrb[0].mxu0
    %v919 = vadd.f32 %v569, %v918
    %v920 = vpop.f32.mrb[0].mxu0
    %v921 = vadd.f32 %v573, %v920
    %922 = vmatprep.mubr.f32.mxu0 0.0
    %923 = vmatmul.mubr.f32.gmra.mrb[0].mxu0 %v670
    %v924 = vpop.f32.mrb[0].mxu0
    %v925 = vadd.f32 %v569, %v924
    %v926 = vpop.f32.mrb[0].mxu0
    %v927 = vadd.f32 %v573, %v926
    %928 = vdwg.mxu0
    %v929 = vld [vmem:[%s1] sm:$0xff]
    %v930 = vld [vmem:[%s1 + $0x8] sm:$0xff]
    %v931 = vld [vmem:[%s1 + $0x10] sm:$0xff]
    %v932 = vld [vmem:[%s1 + $0x18] sm:$0xff]
    %v933 = vld [vmem:[%s1 + $0x20] sm:$0xff]
    %v934 = vld [vmem:[%s1 + $0x28] sm:$0xff]
    %v935 = vld [vmem:[%s1 + $0x30] sm:$0xff]
    %v936 = vld [vmem:[%s1 + $0x38] sm:$0xff]
    %v937 = vld [vmem:[%s1 + $0x40] sm:$0xff]
    %v938 = vld [vmem:[%s1 + $0x48] sm:$0xff]
    %v939 = vld [vmem:[%s1 + $0x50] sm:$0xff]
    %v940 = vld [vmem:[%s1 + $0x58] sm:$0xff]
    %v941 = vld [vmem:[%s1 + $0x60] sm:$0xff]
    %v942 = vld [vmem:[%s1 + $0x68] sm:$0xff]
    %v943 = vld [vmem:[%s1 + $0x70] sm:$0xff]
    %v944 = vld [vmem:[%s1 + $0x78] sm:$0xff]
    %v945 = vld [vmem:[%s1 + $0x80] sm:$0xff]
    %v946 = vld [vmem:[%s1 + $0x88] sm:$0xff]
    %v947 = vld [vmem:[%s1 + $0x90] sm:$0xff]
    %v948 = vld [vmem:[%s1 + $0x98] sm:$0xff]
    %v949 = vld [vmem:[%s1 + $0xa0] sm:$0xff]
    %v950 = vld [vmem:[%s1 + $0xa8] sm:$0xff]
    %v951 = vld [vmem:[%s1 + $0xb0] sm:$0xff]
    %v952 = vld [vmem:[%s1 + $0xb8] sm:$0xff]
    %v953 = vld [vmem:[%s1 + $0xc0] sm:$0xff]
    %v954 = vld [vmem:[%s1 + $0xc8] sm:$0xff]
    %v955 = vld [vmem:[%s1 + $0xd0] sm:$0xff]
    %v956 = vld [vmem:[%s1 + $0xd8] sm:$0xff]
    %v957 = vld [vmem:[%s1 + $0xe0] sm:$0xff]
    %v958 = vld [vmem:[%s1 + $0xe8] sm:$0xff]
    %v959 = vld [vmem:[%s1 + $0xf0] sm:$0xff]
    %v960 = vld [vmem:[%s1 + $0xf8] sm:$0xff]
    %962 = vset.pattern.permute.xlu0 0
    %963 = vperm.xlu0 %962, %v929
    %v964 = vpop.permute.xlu0 %963
    %967 = vset.pattern.permute.xlu0 0
    %968 = vperm.xlu0 %967, %v930
    %v969 = vpop.permute.xlu0 %968
    %972 = vset.pattern.permute.xlu0 0
    %973 = vperm.xlu0 %972, %v931
    %v974 = vpop.permute.xlu0 %973
    %977 = vset.pattern.permute.xlu0 0
    %978 = vperm.xlu0 %977, %v932
    %v979 = vpop.permute.xlu0 %978
    %982 = vset.pattern.permute.xlu0 0
    %983 = vperm.xlu0 %982, %v933
    %v984 = vpop.permute.xlu0 %983
    %987 = vset.pattern.permute.xlu0 0
    %988 = vperm.xlu0 %987, %v934
    %v989 = vpop.permute.xlu0 %988
    %992 = vset.pattern.permute.xlu0 0
    %993 = vperm.xlu0 %992, %v935
    %v994 = vpop.permute.xlu0 %993
    %997 = vset.pattern.permute.xlu0 0
    %998 = vperm.xlu0 %997, %v936
    %v999 = vpop.permute.xlu0 %998
    %1002 = vset.pattern.permute.xlu0 0
    %1003 = vperm.xlu0 %1002, %v937
    %v1004 = vpop.permute.xlu0 %1003
    %1007 = vset.pattern.permute.xlu0 0
    %1008 = vperm.xlu0 %1007, %v938
    %v1009 = vpop.permute.xlu0 %1008
    %1012 = vset.pattern.permute.xlu0 0
    %1013 = vperm.xlu0 %1012, %v939
    %v1014 = vpop.permute.xlu0 %1013
    %1017 = vset.pattern.permute.xlu0 0
    %1018 = vperm.xlu0 %1017, %v940
    %v1019 = vpop.permute.xlu0 %1018
    %1022 = vset.pattern.permute.xlu0 0
    %1023 = vperm.xlu0 %1022, %v941
    %v1024 = vpop.permute.xlu0 %1023
    %1027 = vset.pattern.permute.xlu0 0
    %1028 = vperm.xlu0 %1027, %v942
    %v1029 = vpop.permute.xlu0 %1028
    %1032 = vset.pattern.permute.xlu0 0
    %1033 = vperm.xlu0 %1032, %v943
    %v1034 = vpop.permute.xlu0 %1033
    %1037 = vset.pattern.permute.xlu0 0
    %1038 = vperm.xlu0 %1037, %v944
    %v1039 = vpop.permute.xlu0 %1038
    %1042 = vset.pattern.permute.xlu0 0
    %1043 = vperm.xlu0 %1042, %v945
    %v1044 = vpop.permute.xlu0 %1043
    %1047 = vset.pattern.permute.xlu0 0
    %1048 = vperm.xlu0 %1047, %v946
    %v1049 = vpop.permute.xlu0 %1048
    %1052 = vset.pattern.permute.xlu0 0
    %1053 = vperm.xlu0 %1052, %v947
    %v1054 = vpop.permute.xlu0 %1053
    %1057 = vset.pattern.permute.xlu0 0
    %1058 = vperm.xlu0 %1057, %v948
    %v1059 = vpop.permute.xlu0 %1058
    %1062 = vset.pattern.permute.xlu0 0
    %1063 = vperm.xlu0 %1062, %v949
    %v1064 = vpop.permute.xlu0 %1063
    %1067 = vset.pattern.permute.xlu0 0
    %1068 = vperm.xlu0 %1067, %v950
    %v1069 = vpop.permute.xlu0 %1068
    %1072 = vset.pattern.permute.xlu0 0
    %1073 = vperm.xlu0 %1072, %v951
    %v1074 = vpop.permute.xlu0 %1073
    %1077 = vset.pattern.permute.xlu0 0
    %1078 = vperm.xlu0 %1077, %v952
    %v1079 = vpop.permute.xlu0 %1078
    %1082 = vset.pattern.permute.xlu0 0
    %1083 = vperm.xlu0 %1082, %v953
    %v1084 = vpop.permute.xlu0 %1083
    %1087 = vset.pattern.permute.xlu0 0
    %1088 = vperm.xlu0 %1087, %v954
    %v1089 = vpop.permute.xlu0 %1088
    %1092 = vset.pattern.permute.xlu0 0
    %1093 = vperm.xlu0 %1092, %v955
    %v1094 = vpop.permute.xlu0 %1093
    %1097 = vset.pattern.permute.xlu0 0
    %1098 = vperm.xlu0 %1097, %v956
    %v1099 = vpop.permute.xlu0 %1098
    %1102 = vset.pattern.permute.xlu0 0
    %1103 = vperm.xlu0 %1102, %v957
    %v1104 = vpop.permute.xlu0 %1103
    %1107 = vset.pattern.permute.xlu0 0
    %1108 = vperm.xlu0 %1107, %v958
    %v1109 = vpop.permute.xlu0 %1108
    %1112 = vset.pattern.permute.xlu0 0
    %1113 = vperm.xlu0 %1112, %v959
    %v1114 = vpop.permute.xlu0 %1113
    %1117 = vset.pattern.permute.xlu0 0
    %1118 = vperm.xlu0 %1117, %v960
    %v1119 = vpop.permute.xlu0 %1118
    %v1121 = vmul.f32 %v739, %v964
    %v1122 = vmul.f32 %v745, %v969
    %v1123 = vmul.f32 %v751, %v974
    %v1124 = vmul.f32 %v757, %v979
    %v1125 = vmul.f32 %v763, %v984
    %v1126 = vmul.f32 %v769, %v989
    %v1127 = vmul.f32 %v775, %v994
    %v1128 = vmul.f32 %v781, %v999
    %v1129 = vmul.f32 %v787, %v1004
    %v1130 = vmul.f32 %v793, %v1009
    %v1131 = vmul.f32 %v799, %v1014
    %v1132 = vmul.f32 %v805, %v1019
    %v1133 = vmul.f32 %v811, %v1024
    %v1134 = vmul.f32 %v817, %v1029
    %v1135 = vmul.f32 %v823, %v1034
    %v1136 = vmul.f32 %v829, %v1039
    %v1137 = vmul.f32 %v835, %v1044
    %v1138 = vmul.f32 %v841, %v1049
    %v1139 = vmul.f32 %v847, %v1054
    %v1140 = vmul.f32 %v853, %v1059
    %v1141 = vmul.f32 %v859, %v1064
    %v1142 = vmul.f32 %v865, %v1069
    %v1143 = vmul.f32 %v871, %v1074
    %v1144 = vmul.f32 %v877, %v1079
    %v1145 = vmul.f32 %v883, %v1084
    %v1146 = vmul.f32 %v889, %v1089
    %v1147 = vmul.f32 %v895, %v1094
    %v1148 = vmul.f32 %v901, %v1099
    %v1149 = vmul.f32 %v907, %v1104
    %v1150 = vmul.f32 %v913, %v1109
    %v1151 = vmul.f32 %v919, %v1114
    %v1152 = vmul.f32 %v925, %v1119
    %v1153 = vxor.u32 %v739, 2147483648
    %v1154 = vxor.u32 %v745, 2147483648
    %v1155 = vxor.u32 %v751, 2147483648
    %v1156 = vxor.u32 %v757, 2147483648
    %v1157 = vxor.u32 %v763, 2147483648
    %v1158 = vxor.u32 %v769, 2147483648
    %v1159 = vxor.u32 %v775, 2147483648
    %v1160 = vxor.u32 %v781, 2147483648
    %v1161 = vxor.u32 %v787, 2147483648
    %v1162 = vxor.u32 %v793, 2147483648
    %v1163 = vxor.u32 %v799, 2147483648
    %v1164 = vxor.u32 %v805, 2147483648
    %v1165 = vxor.u32 %v811, 2147483648
    %v1166 = vxor.u32 %v817, 2147483648
    %v1167 = vxor.u32 %v823, 2147483648
    %v1168 = vxor.u32 %v829, 2147483648
    %v1169 = vxor.u32 %v835, 2147483648
    %v1170 = vxor.u32 %v841, 2147483648
    %v1171 = vxor.u32 %v847, 2147483648
    %v1172 = vxor.u32 %v853, 2147483648
    %v1173 = vxor.u32 %v859, 2147483648
    %v1174 = vxor.u32 %v865, 2147483648
    %v1175 = vxor.u32 %v871, 2147483648
    %v1176 = vxor.u32 %v877, 2147483648
    %v1177 = vxor.u32 %v883, 2147483648
    %v1178 = vxor.u32 %v889, 2147483648
    %v1179 = vxor.u32 %v895, 2147483648
    %v1180 = vxor.u32 %v901, 2147483648
    %v1181 = vxor.u32 %v907, 2147483648
    %v1182 = vxor.u32 %v913, 2147483648
    %v1183 = vxor.u32 %v919, 2147483648
    %v1184 = vxor.u32 %v925, 2147483648
    %v1185 = vmul.f32 %v1153, 1.442695
    %v1186 = vpow.pop %v1185
    %v1187 = vmul.f32 %v1154, 1.442695
    %v1188 = vpow.pop %v1187
    %v1189 = vmul.f32 %v1155, 1.442695
    %v1190 = vpow.pop %v1189
    %v1191 = vmul.f32 %v1156, 1.442695
    %v1192 = vpow.pop %v1191
    %v1193 = vmul.f32 %v1157, 1.442695
    %v1194 = vpow.pop %v1193
    %v1195 = vmul.f32 %v1158, 1.442695
    %v1196 = vpow.pop %v1195
    %v1197 = vmul.f32 %v1159, 1.442695
    %v1198 = vpow.pop %v1197
    %v1199 = vmul.f32 %v1160, 1.442695
    %v1200 = vpow.pop %v1199
    %v1201 = vmul.f32 %v1161, 1.442695
    %v1202 = vpow.pop %v1201
    %v1203 = vmul.f32 %v1162, 1.442695
    %v1204 = vpow.pop %v1203
    %v1205 = vmul.f32 %v1163, 1.442695
    %v1206 = vpow.pop %v1205
    %v1207 = vmul.f32 %v1164, 1.442695
    %v1208 = vpow.pop %v1207
    %v1209 = vmul.f32 %v1165, 1.442695
    %v1210 = vpow.pop %v1209
    %v1211 = vmul.f32 %v1166, 1.442695
    %v1212 = vpow.pop %v1211
    %v1213 = vmul.f32 %v1167, 1.442695
    %v1214 = vpow.pop %v1213
    %v1215 = vmul.f32 %v1168, 1.442695
    %v1216 = vpow.pop %v1215
    %v1217 = vmul.f32 %v1169, 1.442695
    %v1218 = vpow.pop %v1217
    %v1219 = vmul.f32 %v1170, 1.442695
    %v1220 = vpow.pop %v1219
    %v1221 = vmul.f32 %v1171, 1.442695
    %v1222 = vpow.pop %v1221
    %v1223 = vmul.f32 %v1172, 1.442695
    %v1224 = vpow.pop %v1223
    %v1225 = vmul.f32 %v1173, 1.442695
    %v1226 = vpow.pop %v1225
    %v1227 = vmul.f32 %v1174, 1.442695
    %v1228 = vpow.pop %v1227
    %v1229 = vmul.f32 %v1175, 1.442695
    %v1230 = vpow.pop %v1229
    %v1231 = vmul.f32 %v1176, 1.442695
    %v1232 = vpow.pop %v1231
    %v1233 = vmul.f32 %v1177, 1.442695
    %v1234 = vpow.pop %v1233
    %v1235 = vmul.f32 %v1178, 1.442695
    %v1236 = vpow.pop %v1235
    %v1237 = vmul.f32 %v1179, 1.442695
    %v1238 = vpow.pop %v1237
    %v1239 = vmul.f32 %v1180, 1.442695
    %v1240 = vpow.pop %v1239
    %v1241 = vmul.f32 %v1181, 1.442695
    %v1242 = vpow.pop %v1241
    %v1243 = vmul.f32 %v1182, 1.442695
    %v1244 = vpow.pop %v1243
    %v1245 = vmul.f32 %v1183, 1.442695
    %v1246 = vpow.pop %v1245
    %v1247 = vmul.f32 %v1184, 1.442695
    %v1248 = vpow.pop %v1247
    %v1249 = vadd.f32 %v1186, 1.0
    %v1250 = vadd.f32 %v1188, 1.0
    %v1251 = vadd.f32 %v1190, 1.0
    %v1252 = vadd.f32 %v1192, 1.0
    %v1253 = vadd.f32 %v1194, 1.0
    %v1254 = vadd.f32 %v1196, 1.0
    %v1255 = vadd.f32 %v1198, 1.0
    %v1256 = vadd.f32 %v1200, 1.0
    %v1257 = vadd.f32 %v1202, 1.0
    %v1258 = vadd.f32 %v1204, 1.0
    %v1259 = vadd.f32 %v1206, 1.0
    %v1260 = vadd.f32 %v1208, 1.0
    %v1261 = vadd.f32 %v1210, 1.0
    %v1262 = vadd.f32 %v1212, 1.0
    %v1263 = vadd.f32 %v1214, 1.0
    %v1264 = vadd.f32 %v1216, 1.0
    %v1265 = vadd.f32 %v1218, 1.0
    %v1266 = vadd.f32 %v1220, 1.0
    %v1267 = vadd.f32 %v1222, 1.0
    %v1268 = vadd.f32 %v1224, 1.0
    %v1269 = vadd.f32 %v1226, 1.0
    %v1270 = vadd.f32 %v1228, 1.0
    %v1271 = vadd.f32 %v1230, 1.0
    %v1272 = vadd.f32 %v1232, 1.0
    %v1273 = vadd.f32 %v1234, 1.0
    %v1274 = vadd.f32 %v1236, 1.0
    %v1275 = vadd.f32 %v1238, 1.0
    %v1276 = vadd.f32 %v1240, 1.0
    %v1277 = vadd.f32 %v1242, 1.0
    %v1278 = vadd.f32 %v1244, 1.0
    %v1279 = vadd.f32 %v1246, 1.0
    %v1280 = vadd.f32 %v1248, 1.0
    %v1281 = vrcp.pop %v1249
    %v1282 = vmul.f32 1.0, %v1281
    %v1283 = vrcp.pop %v1250
    %v1284 = vmul.f32 1.0, %v1283
    %v1285 = vrcp.pop %v1251
    %v1286 = vmul.f32 1.0, %v1285
    %v1287 = vrcp.pop %v1252
    %v1288 = vmul.f32 1.0, %v1287
    %v1289 = vrcp.pop %v1253
    %v1290 = vmul.f32 1.0, %v1289
    %v1291 = vrcp.pop %v1254
    %v1292 = vmul.f32 1.0, %v1291
    %v1293 = vrcp.pop %v1255
    %v1294 = vmul.f32 1.0, %v1293
    %v1295 = vrcp.pop %v1256
    %v1296 = vmul.f32 1.0, %v1295
    %v1297 = vrcp.pop %v1257
    %v1298 = vmul.f32 1.0, %v1297
    %v1299 = vrcp.pop %v1258
    %v1300 = vmul.f32 1.0, %v1299
    %v1301 = vrcp.pop %v1259
    %v1302 = vmul.f32 1.0, %v1301
    %v1303 = vrcp.pop %v1260
    %v1304 = vmul.f32 1.0, %v1303
    %v1305 = vrcp.pop %v1261
    %v1306 = vmul.f32 1.0, %v1305
    %v1307 = vrcp.pop %v1262
    %v1308 = vmul.f32 1.0, %v1307
    %v1309 = vrcp.pop %v1263
    %v1310 = vmul.f32 1.0, %v1309
    %v1311 = vrcp.pop %v1264
    %v1312 = vmul.f32 1.0, %v1311
    %v1313 = vrcp.pop %v1265
    %v1314 = vmul.f32 1.0, %v1313
    %v1315 = vrcp.pop %v1266
    %v1316 = vmul.f32 1.0, %v1315
    %v1317 = vrcp.pop %v1267
    %v1318 = vmul.f32 1.0, %v1317
    %v1319 = vrcp.pop %v1268
    %v1320 = vmul.f32 1.0, %v1319
    %v1321 = vrcp.pop %v1269
    %v1322 = vmul.f32 1.0, %v1321
    %v1323 = vrcp.pop %v1270
    %v1324 = vmul.f32 1.0, %v1323
    %v1325 = vrcp.pop %v1271
    %v1326 = vmul.f32 1.0, %v1325
    %v1327 = vrcp.pop %v1272
    %v1328 = vmul.f32 1.0, %v1327
    %v1329 = vrcp.pop %v1273
    %v1330 = vmul.f32 1.0, %v1329
    %v1331 = vrcp.pop %v1274
    %v1332 = vmul.f32 1.0, %v1331
    %v1333 = vrcp.pop %v1275
    %v1334 = vmul.f32 1.0, %v1333
    %v1335 = vrcp.pop %v1276
    %v1336 = vmul.f32 1.0, %v1335
    %v1337 = vrcp.pop %v1277
    %v1338 = vmul.f32 1.0, %v1337
    %v1339 = vrcp.pop %v1278
    %v1340 = vmul.f32 1.0, %v1339
    %v1341 = vrcp.pop %v1279
    %v1342 = vmul.f32 1.0, %v1341
    %v1343 = vrcp.pop %v1280
    %v1344 = vmul.f32 1.0, %v1343
    %1377 = vrot.lane.b32.xlu0 %v1282, 64
    %v1378 = vpop.permute.xlu0 %1377
    %1379 = vrot.lane.b32.xlu0 %v1284, 64
    %v1380 = vpop.permute.xlu0 %1379
    %1381 = vrot.lane.b32.xlu0 %v1286, 64
    %v1382 = vpop.permute.xlu0 %1381
    %1383 = vrot.lane.b32.xlu0 %v1288, 64
    %v1384 = vpop.permute.xlu0 %1383
    %1385 = vrot.lane.b32.xlu0 %v1290, 64
    %v1386 = vpop.permute.xlu0 %1385
    %1387 = vrot.lane.b32.xlu0 %v1292, 64
    %v1388 = vpop.permute.xlu0 %1387
    %1389 = vrot.lane.b32.xlu0 %v1294, 64
    %v1390 = vpop.permute.xlu0 %1389
    %1391 = vrot.lane.b32.xlu0 %v1296, 64
    %v1392 = vpop.permute.xlu0 %1391
    %1393 = vrot.lane.b32.xlu0 %v1298, 64
    %v1394 = vpop.permute.xlu0 %1393
    %1395 = vrot.lane.b32.xlu0 %v1300, 64
    %v1396 = vpop.permute.xlu0 %1395
    %1397 = vrot.lane.b32.xlu0 %v1302, 64
    %v1398 = vpop.permute.xlu0 %1397
    %1399 = vrot.lane.b32.xlu0 %v1304, 64
    %v1400 = vpop.permute.xlu0 %1399
    %1401 = vrot.lane.b32.xlu0 %v1306, 64
    %v1402 = vpop.permute.xlu0 %1401
    %1403 = vrot.lane.b32.xlu0 %v1308, 64
    %v1404 = vpop.permute.xlu0 %1403
    %1405 = vrot.lane.b32.xlu0 %v1310, 64
    %v1406 = vpop.permute.xlu0 %1405
    %1407 = vrot.lane.b32.xlu0 %v1312, 64
    %v1408 = vpop.permute.xlu0 %1407
    %1409 = vrot.lane.b32.xlu0 %v1314, 64
    %v1410 = vpop.permute.xlu0 %1409
    %1411 = vrot.lane.b32.xlu0 %v1316, 64
    %v1412 = vpop.permute.xlu0 %1411
    %1413 = vrot.lane.b32.xlu0 %v1318, 64
    %v1414 = vpop.permute.xlu0 %1413
    %1415 = vrot.lane.b32.xlu0 %v1320, 64
    %v1416 = vpop.permute.xlu0 %1415
    %1417 = vrot.lane.b32.xlu0 %v1322, 64
    %v1418 = vpop.permute.xlu0 %1417
    %1419 = vrot.lane.b32.xlu0 %v1324, 64
    %v1420 = vpop.permute.xlu0 %1419
    %1421 = vrot.lane.b32.xlu0 %v1326, 64
    %v1422 = vpop.permute.xlu0 %1421
    %1423 = vrot.lane.b32.xlu0 %v1328, 64
    %v1424 = vpop.permute.xlu0 %1423
    %1425 = vrot.lane.b32.xlu0 %v1330, 64
    %v1426 = vpop.permute.xlu0 %1425
    %1427 = vrot.lane.b32.xlu0 %v1332, 64
    %v1428 = vpop.permute.xlu0 %1427
    %1429 = vrot.lane.b32.xlu0 %v1334, 64
    %v1430 = vpop.permute.xlu0 %1429
    %1431 = vrot.lane.b32.xlu0 %v1336, 64
    %v1432 = vpop.permute.xlu0 %1431
    %1433 = vrot.lane.b32.xlu0 %v1338, 64
    %v1434 = vpop.permute.xlu0 %1433
    %1435 = vrot.lane.b32.xlu0 %v1340, 64
    %v1436 = vpop.permute.xlu0 %1435
    %1437 = vrot.lane.b32.xlu0 %v1342, 64
    %v1438 = vpop.permute.xlu0 %1437
    %1439 = vrot.lane.b32.xlu0 %v1344, 64
    %v1440 = vpop.permute.xlu0 %1439
    %v1473 = vmul.f32 %v1121, %v1378
    %v1474 = vmul.f32 %v1122, %v1380
    %v1475 = vmul.f32 %v1123, %v1382
    %v1476 = vmul.f32 %v1124, %v1384
    %v1477 = vmul.f32 %v1125, %v1386
    %v1478 = vmul.f32 %v1126, %v1388
    %v1479 = vmul.f32 %v1127, %v1390
    %v1480 = vmul.f32 %v1128, %v1392
    %v1481 = vmul.f32 %v1129, %v1394
    %v1482 = vmul.f32 %v1130, %v1396
    %v1483 = vmul.f32 %v1131, %v1398
    %v1484 = vmul.f32 %v1132, %v1400
    %v1485 = vmul.f32 %v1133, %v1402
    %v1486 = vmul.f32 %v1134, %v1404
    %v1487 = vmul.f32 %v1135, %v1406
    %v1488 = vmul.f32 %v1136, %v1408
    %v1489 = vmul.f32 %v1137, %v1410
    %v1490 = vmul.f32 %v1138, %v1412
    %v1491 = vmul.f32 %v1139, %v1414
    %v1492 = vmul.f32 %v1140, %v1416
    %v1493 = vmul.f32 %v1141, %v1418
    %v1494 = vmul.f32 %v1142, %v1420
    %v1495 = vmul.f32 %v1143, %v1422
    %v1496 = vmul.f32 %v1144, %v1424
    %v1497 = vmul.f32 %v1145, %v1426
    %v1498 = vmul.f32 %v1146, %v1428
    %v1499 = vmul.f32 %v1147, %v1430
    %v1500 = vmul.f32 %v1148, %v1432
    %v1501 = vmul.f32 %v1149, %v1434
    %v1502 = vmul.f32 %v1150, %v1436
    %v1503 = vmul.f32 %v1151, %v1438
    %v1504 = vmul.f32 %v1152, %v1440
    %v1505 = vxor.u32 %v741, 2147483648
    %v1506 = vxor.u32 %v747, 2147483648
    %v1507 = vxor.u32 %v753, 2147483648
    %v1508 = vxor.u32 %v759, 2147483648
    %v1509 = vxor.u32 %v765, 2147483648
    %v1510 = vxor.u32 %v771, 2147483648
    %v1511 = vxor.u32 %v777, 2147483648
    %v1512 = vxor.u32 %v783, 2147483648
    %v1513 = vxor.u32 %v789, 2147483648
    %v1514 = vxor.u32 %v795, 2147483648
    %v1515 = vxor.u32 %v801, 2147483648
    %v1516 = vxor.u32 %v807, 2147483648
    %v1517 = vxor.u32 %v813, 2147483648
    %v1518 = vxor.u32 %v819, 2147483648
    %v1519 = vxor.u32 %v825, 2147483648
    %v1520 = vxor.u32 %v831, 2147483648
    %v1521 = vxor.u32 %v837, 2147483648
    %v1522 = vxor.u32 %v843, 2147483648
    %v1523 = vxor.u32 %v849, 2147483648
    %v1524 = vxor.u32 %v855, 2147483648
    %v1525 = vxor.u32 %v861, 2147483648
    %v1526 = vxor.u32 %v867, 2147483648
    %v1527 = vxor.u32 %v873, 2147483648
    %v1528 = vxor.u32 %v879, 2147483648
    %v1529 = vxor.u32 %v885, 2147483648
    %v1530 = vxor.u32 %v891, 2147483648
    %v1531 = vxor.u32 %v897, 2147483648
    %v1532 = vxor.u32 %v903, 2147483648
    %v1533 = vxor.u32 %v909, 2147483648
    %v1534 = vxor.u32 %v915, 2147483648
    %v1535 = vxor.u32 %v921, 2147483648
    %v1536 = vxor.u32 %v927, 2147483648
    %v1537 = vmul.f32 %v1505, 1.442695
    %v1538 = vpow.pop %v1537
    %v1539 = vmul.f32 %v1506, 1.442695
    %v1540 = vpow.pop %v1539
    %v1541 = vmul.f32 %v1507, 1.442695
    %v1542 = vpow.pop %v1541
    %v1543 = vmul.f32 %v1508, 1.442695
    %v1544 = vpow.pop %v1543
    %v1545 = vmul.f32 %v1509, 1.442695
    %v1546 = vpow.pop %v1545
    %v1547 = vmul.f32 %v1510, 1.442695
    %v1548 = vpow.pop %v1547
    %v1549 = vmul.f32 %v1511, 1.442695
    %v1550 = vpow.pop %v1549
    %v1551 = vmul.f32 %v1512, 1.442695
    %v1552 = vpow.pop %v1551
    %v1553 = vmul.f32 %v1513, 1.442695
    %v1554 = vpow.pop %v1553
    %v1555 = vmul.f32 %v1514, 1.442695
    %v1556 = vpow.pop %v1555
    %v1557 = vmul.f32 %v1515, 1.442695
    %v1558 = vpow.pop %v1557
    %v1559 = vmul.f32 %v1516, 1.442695
    %v1560 = vpow.pop %v1559
    %v1561 = vmul.f32 %v1517, 1.442695
    %v1562 = vpow.pop %v1561
    %v1563 = vmul.f32 %v1518, 1.442695
    %v1564 = vpow.pop %v1563
    %v1565 = vmul.f32 %v1519, 1.442695
    %v1566 = vpow.pop %v1565
    %v1567 = vmul.f32 %v1520, 1.442695
    %v1568 = vpow.pop %v1567
    %v1569 = vmul.f32 %v1521, 1.442695
    %v1570 = vpow.pop %v1569
    %v1571 = vmul.f32 %v1522, 1.442695
    %v1572 = vpow.pop %v1571
    %v1573 = vmul.f32 %v1523, 1.442695
    %v1574 = vpow.pop %v1573
    %v1575 = vmul.f32 %v1524, 1.442695
    %v1576 = vpow.pop %v1575
    %v1577 = vmul.f32 %v1525, 1.442695
    %v1578 = vpow.pop %v1577
    %v1579 = vmul.f32 %v1526, 1.442695
    %v1580 = vpow.pop %v1579
    %v1581 = vmul.f32 %v1527, 1.442695
    %v1582 = vpow.pop %v1581
    %v1583 = vmul.f32 %v1528, 1.442695
    %v1584 = vpow.pop %v1583
    %v1585 = vmul.f32 %v1529, 1.442695
    %v1586 = vpow.pop %v1585
    %v1587 = vmul.f32 %v1530, 1.442695
    %v1588 = vpow.pop %v1587
    %v1589 = vmul.f32 %v1531, 1.442695
    %v1590 = vpow.pop %v1589
    %v1591 = vmul.f32 %v1532, 1.442695
    %v1592 = vpow.pop %v1591
    %v1593 = vmul.f32 %v1533, 1.442695
    %v1594 = vpow.pop %v1593
    %v1595 = vmul.f32 %v1534, 1.442695
    %v1596 = vpow.pop %v1595
    %v1597 = vmul.f32 %v1535, 1.442695
    %v1598 = vpow.pop %v1597
    %v1599 = vmul.f32 %v1536, 1.442695
    %v1600 = vpow.pop %v1599
    %v1601 = vadd.f32 %v1538, 1.0
    %v1602 = vadd.f32 %v1540, 1.0
    %v1603 = vadd.f32 %v1542, 1.0
    %v1604 = vadd.f32 %v1544, 1.0
    %v1605 = vadd.f32 %v1546, 1.0
    %v1606 = vadd.f32 %v1548, 1.0
    %v1607 = vadd.f32 %v1550, 1.0
    %v1608 = vadd.f32 %v1552, 1.0
    %v1609 = vadd.f32 %v1554, 1.0
    %v1610 = vadd.f32 %v1556, 1.0
    %v1611 = vadd.f32 %v1558, 1.0
    %v1612 = vadd.f32 %v1560, 1.0
    %v1613 = vadd.f32 %v1562, 1.0
    %v1614 = vadd.f32 %v1564, 1.0
    %v1615 = vadd.f32 %v1566, 1.0
    %v1616 = vadd.f32 %v1568, 1.0
    %v1617 = vadd.f32 %v1570, 1.0
    %v1618 = vadd.f32 %v1572, 1.0
    %v1619 = vadd.f32 %v1574, 1.0
    %v1620 = vadd.f32 %v1576, 1.0
    %v1621 = vadd.f32 %v1578, 1.0
    %v1622 = vadd.f32 %v1580, 1.0
    %v1623 = vadd.f32 %v1582, 1.0
    %v1624 = vadd.f32 %v1584, 1.0
    %v1625 = vadd.f32 %v1586, 1.0
    %v1626 = vadd.f32 %v1588, 1.0
    %v1627 = vadd.f32 %v1590, 1.0
    %v1628 = vadd.f32 %v1592, 1.0
    %v1629 = vadd.f32 %v1594, 1.0
    %v1630 = vadd.f32 %v1596, 1.0
    %v1631 = vadd.f32 %v1598, 1.0
    %v1632 = vadd.f32 %v1600, 1.0
    %v1633 = vrcp.pop %v1601
    %v1634 = vmul.f32 1.0, %v1633
    %v1635 = vrcp.pop %v1602
    %v1636 = vmul.f32 1.0, %v1635
    %v1637 = vrcp.pop %v1603
    %v1638 = vmul.f32 1.0, %v1637
    %v1639 = vrcp.pop %v1604
    %v1640 = vmul.f32 1.0, %v1639
    %v1641 = vrcp.pop %v1605
    %v1642 = vmul.f32 1.0, %v1641
    %v1643 = vrcp.pop %v1606
    %v1644 = vmul.f32 1.0, %v1643
    %v1645 = vrcp.pop %v1607
    %v1646 = vmul.f32 1.0, %v1645
    %v1647 = vrcp.pop %v1608
    %v1648 = vmul.f32 1.0, %v1647
    %v1649 = vrcp.pop %v1609
    %v1650 = vmul.f32 1.0, %v1649
    %v1651 = vrcp.pop %v1610
    %v1652 = vmul.f32 1.0, %v1651
    %v1653 = vrcp.pop %v1611
    %v1654 = vmul.f32 1.0, %v1653
    %v1655 = vrcp.pop %v1612
    %v1656 = vmul.f32 1.0, %v1655
    %v1657 = vrcp.pop %v1613
    %v1658 = vmul.f32 1.0, %v1657
    %v1659 = vrcp.pop %v1614
    %v1660 = vmul.f32 1.0, %v1659
    %v1661 = vrcp.pop %v1615
    %v1662 = vmul.f32 1.0, %v1661
    %v1663 = vrcp.pop %v1616
    %v1664 = vmul.f32 1.0, %v1663
    %v1665 = vrcp.pop %v1617
    %v1666 = vmul.f32 1.0, %v1665
    %v1667 = vrcp.pop %v1618
    %v1668 = vmul.f32 1.0, %v1667
    %v1669 = vrcp.pop %v1619
    %v1670 = vmul.f32 1.0, %v1669
    %v1671 = vrcp.pop %v1620
    %v1672 = vmul.f32 1.0, %v1671
    %v1673 = vrcp.pop %v1621
    %v1674 = vmul.f32 1.0, %v1673
    %v1675 = vrcp.pop %v1622
    %v1676 = vmul.f32 1.0, %v1675
    %v1677 = vrcp.pop %v1623
    %v1678 = vmul.f32 1.0, %v1677
    %v1679 = vrcp.pop %v1624
    %v1680 = vmul.f32 1.0, %v1679
    %v1681 = vrcp.pop %v1625
    %v1682 = vmul.f32 1.0, %v1681
    %v1683 = vrcp.pop %v1626
    %v1684 = vmul.f32 1.0, %v1683
    %v1685 = vrcp.pop %v1627
    %v1686 = vmul.f32 1.0, %v1685
    %v1687 = vrcp.pop %v1628
    %v1688 = vmul.f32 1.0, %v1687
    %v1689 = vrcp.pop %v1629
    %v1690 = vmul.f32 1.0, %v1689
    %v1691 = vrcp.pop %v1630
    %v1692 = vmul.f32 1.0, %v1691
    %v1693 = vrcp.pop %v1631
    %v1694 = vmul.f32 1.0, %v1693
    %v1695 = vrcp.pop %v1632
    %v1696 = vmul.f32 1.0, %v1695
    %1697 = vxpose.xlu0.b32.start [1/16] %v1473, 128
    %1698 = vxpose.xlu0.b32.cont [2/16] %v1474, 128
    %1699 = vxpose.xlu0.b32.cont [3/16] %v1475, 128
    %1700 = vxpose.xlu0.b32.cont [4/16] %v1476, 128
    %1701 = vxpose.xlu0.b32.cont [5/16] %v1477, 128
    %1702 = vxpose.xlu0.b32.cont [6/16] %v1478, 128
    %1703 = vxpose.xlu0.b32.cont [7/16] %v1479, 128
    %1704 = vxpose.xlu0.b32.cont [8/16] %v1480, 128
    %1705 = vxpose.xlu0.b32.cont [9/16] %v1481, 128
    %1706 = vxpose.xlu0.b32.cont [10/16] %v1482, 128
    %1707 = vxpose.xlu0.b32.cont [11/16] %v1483, 128
    %1708 = vxpose.xlu0.b32.cont [12/16] %v1484, 128
    %1709 = vxpose.xlu0.b32.cont [13/16] %v1485, 128
    %1710 = vxpose.xlu0.b32.cont [14/16] %v1486, 128
    %1711 = vxpose.xlu0.b32.cont [15/16] %v1487, 128
    %1712 = vxpose.xlu0.b32.end [16/16] %v1488, 128
    %v1713 = vpop.trf.xlu0
    %v1714 = vpop.trf.xlu0
    %v1715 = vpop.trf.xlu0
    %v1716 = vpop.trf.xlu0
    %v1717 = vpop.trf.xlu0
    %v1718 = vpop.trf.xlu0
    %v1719 = vpop.trf.xlu0
    %v1720 = vpop.trf.xlu0
    %v1721 = vpop.trf.xlu0
    %v1722 = vpop.trf.xlu0
    %v1723 = vpop.trf.xlu0
    %v1724 = vpop.trf.xlu0
    %v1725 = vpop.trf.xlu0
    %v1726 = vpop.trf.xlu0
    %v1727 = vpop.trf.xlu0
    %v1728 = vpop.trf.xlu0
    %1729 = vxpose.xlu0.b32.start [1/16] %v1489, 128
    %1730 = vxpose.xlu0.b32.cont [2/16] %v1490, 128
    %1731 = vxpose.xlu0.b32.cont [3/16] %v1491, 128
    %1732 = vxpose.xlu0.b32.cont [4/16] %v1492, 128
    %1733 = vxpose.xlu0.b32.cont [5/16] %v1493, 128
    %1734 = vxpose.xlu0.b32.cont [6/16] %v1494, 128
    %1735 = vxpose.xlu0.b32.cont [7/16] %v1495, 128
    %1736 = vxpose.xlu0.b32.cont [8/16] %v1496, 128
    %1737 = vxpose.xlu0.b32.cont [9/16] %v1497, 128
    %1738 = vxpose.xlu0.b32.cont [10/16] %v1498, 128
    %1739 = vxpose.xlu0.b32.cont [11/16] %v1499, 128
    %1740 = vxpose.xlu0.b32.cont [12/16] %v1500, 128
    %1741 = vxpose.xlu0.b32.cont [13/16] %v1501, 128
    %1742 = vxpose.xlu0.b32.cont [14/16] %v1502, 128
    %1743 = vxpose.xlu0.b32.cont [15/16] %v1503, 128
    %1744 = vxpose.xlu0.b32.end [16/16] %v1504, 128
    %v1745 = vpop.trf.xlu0
    %v1746 = vpop.trf.xlu0
    %v1747 = vpop.trf.xlu0
    %v1748 = vpop.trf.xlu0
    %v1749 = vpop.trf.xlu0
    %v1750 = vpop.trf.xlu0
    %v1751 = vpop.trf.xlu0
    %v1752 = vpop.trf.xlu0
    %v1753 = vpop.trf.xlu0
    %v1754 = vpop.trf.xlu0
    %v1755 = vpop.trf.xlu0
    %v1756 = vpop.trf.xlu0
    %v1757 = vpop.trf.xlu0
    %v1758 = vpop.trf.xlu0
    %v1759 = vpop.trf.xlu0
    %v1760 = vpop.trf.xlu0
    %1761 = vst [vmem:[#allocation2] sm:$0xff] %v1713
    %1762 = vst [vmem:[#allocation2 + $0x8] sm:$0xff] %v1745
    %1763 = vst [vmem:[#allocation2 + $0x10] sm:$0xff] %v1714
    %1764 = vst [vmem:[#allocation2 + $0x18] sm:$0xff] %v1746
    %1765 = vst [vmem:[#allocation2 + $0x20] sm:$0xff] %v1715
    %1766 = vst [vmem:[#allocation2 + $0x28] sm:$0xff] %v1747
    %1767 = vst [vmem:[#allocation2 + $0x30] sm:$0xff] %v1716
    %1768 = vst [vmem:[#allocation2 + $0x38] sm:$0xff] %v1748
    %1801 = vrot.lane.b32.xlu0 %v1473, 96
    %v1802 = vpop.permute.xlu0 %1801
    %1803 = vrot.lane.b32.xlu0 %v1474, 96
    %v1804 = vpop.permute.xlu0 %1803
    %1805 = vrot.lane.b32.xlu0 %v1475, 96
    %v1806 = vpop.permute.xlu0 %1805
    %1807 = vrot.lane.b32.xlu0 %v1476, 96
    %v1808 = vpop.permute.xlu0 %1807
    %1809 = vrot.lane.b32.xlu0 %v1477, 96
    %v1810 = vpop.permute.xlu0 %1809
    %1811 = vrot.lane.b32.xlu0 %v1478, 96
    %v1812 = vpop.permute.xlu0 %1811
    %1813 = vrot.lane.b32.xlu0 %v1479, 96
    %v1814 = vpop.permute.xlu0 %1813
    %1815 = vrot.lane.b32.xlu0 %v1480, 96
    %v1816 = vpop.permute.xlu0 %1815
    %1817 = vrot.lane.b32.xlu0 %v1481, 96
    %v1818 = vpop.permute.xlu0 %1817
    %1819 = vrot.lane.b32.xlu0 %v1482, 96
    %v1820 = vpop.permute.xlu0 %1819
    %1821 = vrot.lane.b32.xlu0 %v1483, 96
    %v1822 = vpop.permute.xlu0 %1821
    %1823 = vrot.lane.b32.xlu0 %v1484, 96
    %v1824 = vpop.permute.xlu0 %1823
    %1825 = vrot.lane.b32.xlu0 %v1485, 96
    %v1826 = vpop.permute.xlu0 %1825
    %1827 = vrot.lane.b32.xlu0 %v1486, 96
    %v1828 = vpop.permute.xlu0 %1827
    %1829 = vrot.lane.b32.xlu0 %v1487, 96
    %v1830 = vpop.permute.xlu0 %1829
    %1831 = vrot.lane.b32.xlu0 %v1488, 96
    %v1832 = vpop.permute.xlu0 %1831
    %1833 = vrot.lane.b32.xlu0 %v1489, 96
    %v1834 = vpop.permute.xlu0 %1833
    %1835 = vrot.lane.b32.xlu0 %v1490, 96
    %v1836 = vpop.permute.xlu0 %1835
    %1837 = vrot.lane.b32.xlu0 %v1491, 96
    %v1838 = vpop.permute.xlu0 %1837
    %1839 = vrot.lane.b32.xlu0 %v1492, 96
    %v1840 = vpop.permute.xlu0 %1839
    %1841 = vrot.lane.b32.xlu0 %v1493, 96
    %v1842 = vpop.permute.xlu0 %1841
    %1843 = vrot.lane.b32.xlu0 %v1494, 96
    %v1844 = vpop.permute.xlu0 %1843
    %1845 = vrot.lane.b32.xlu0 %v1495, 96
    %v1846 = vpop.permute.xlu0 %1845
    %1847 = vrot.lane.b32.xlu0 %v1496, 96
    %v1848 = vpop.permute.xlu0 %1847
    %1849 = vrot.lane.b32.xlu0 %v1497, 96
    %v1850 = vpop.permute.xlu0 %1849
    %1851 = vrot.lane.b32.xlu0 %v1498, 96
    %v1852 = vpop.permute.xlu0 %1851
    %1853 = vrot.lane.b32.xlu0 %v1499, 96
    %v1854 = vpop.permute.xlu0 %1853
    %1855 = vrot.lane.b32.xlu0 %v1500, 96
    %v1856 = vpop.permute.xlu0 %1855
    %1857 = vrot.lane.b32.xlu0 %v1501, 96
    %v1858 = vpop.permute.xlu0 %1857
    %1859 = vrot.lane.b32.xlu0 %v1502, 96
    %v1860 = vpop.permute.xlu0 %1859
    %1861 = vrot.lane.b32.xlu0 %v1503, 96
    %v1862 = vpop.permute.xlu0 %1861
    %1863 = vrot.lane.b32.xlu0 %v1504, 96
    %v1864 = vpop.permute.xlu0 %1863
    %1897 = vxpose.xlu0.b32.start [1/16] %v1802, 128
    %1898 = vxpose.xlu0.b32.cont [2/16] %v1804, 128
    %1899 = vxpose.xlu0.b32.cont [3/16] %v1806, 128
    %1900 = vxpose.xlu0.b32.cont [4/16] %v1808, 128
    %1901 = vxpose.xlu0.b32.cont [5/16] %v1810, 128
    %1902 = vxpose.xlu0.b32.cont [6/16] %v1812, 128
    %1903 = vxpose.xlu0.b32.cont [7/16] %v1814, 128
    %1904 = vxpose.xlu0.b32.cont [8/16] %v1816, 128
    %1905 = vxpose.xlu0.b32.cont [9/16] %v1818, 128
    %1906 = vxpose.xlu0.b32.cont [10/16] %v1820, 128
    %1907 = vxpose.xlu0.b32.cont [11/16] %v1822, 128
    %1908 = vxpose.xlu0.b32.cont [12/16] %v1824, 128
    %1909 = vxpose.xlu0.b32.cont [13/16] %v1826, 128
    %1910 = vxpose.xlu0.b32.cont [14/16] %v1828, 128
    %1911 = vxpose.xlu0.b32.cont [15/16] %v1830, 128
    %1912 = vxpose.xlu0.b32.end [16/16] %v1832, 128
    %v1913 = vpop.trf.xlu0
    %v1914 = vpop.trf.xlu0
    %v1915 = vpop.trf.xlu0
    %v1916 = vpop.trf.xlu0
    %v1917 = vpop.trf.xlu0
    %v1918 = vpop.trf.xlu0
    %v1919 = vpop.trf.xlu0
    %v1920 = vpop.trf.xlu0
    %v1921 = vpop.trf.xlu0
    %v1922 = vpop.trf.xlu0
    %v1923 = vpop.trf.xlu0
    %v1924 = vpop.trf.xlu0
    %v1925 = vpop.trf.xlu0
    %v1926 = vpop.trf.xlu0
    %v1927 = vpop.trf.xlu0
    %v1928 = vpop.trf.xlu0
    %1929 = vxpose.xlu0.b32.start [1/16] %v1834, 128
    %1930 = vxpose.xlu0.b32.cont [2/16] %v1836, 128
    %1931 = vxpose.xlu0.b32.cont [3/16] %v1838, 128
    %1932 = vxpose.xlu0.b32.cont [4/16] %v1840, 128
    %1933 = vxpose.xlu0.b32.cont [5/16] %v1842, 128
    %1934 = vxpose.xlu0.b32.cont [6/16] %v1844, 128
    %1935 = vxpose.xlu0.b32.cont [7/16] %v1846, 128
    %1936 = vxpose.xlu0.b32.cont [8/16] %v1848, 128
    %1937 = vxpose.xlu0.b32.cont [9/16] %v1850, 128
    %1938 = vxpose.xlu0.b32.cont [10/16] %v1852, 128
    %1939 = vxpose.xlu0.b32.cont [11/16] %v1854, 128
    %1940 = vxpose.xlu0.b32.cont [12/16] %v1856, 128
    %1941 = vxpose.xlu0.b32.cont [13/16] %v1858, 128
    %1942 = vxpose.xlu0.b32.cont [14/16] %v1860, 128
    %1943 = vxpose.xlu0.b32.cont [15/16] %v1862, 128
    %1944 = vxpose.xlu0.b32.end [16/16] %v1864, 128
    %v1945 = vpop.trf.xlu0
    %v1946 = vpop.trf.xlu0
    %v1947 = vpop.trf.xlu0
    %v1948 = vpop.trf.xlu0
    %v1949 = vpop.trf.xlu0
    %v1950 = vpop.trf.xlu0
    %v1951 = vpop.trf.xlu0
    %v1952 = vpop.trf.xlu0
    %v1953 = vpop.trf.xlu0
    %v1954 = vpop.trf.xlu0
    %v1955 = vpop.trf.xlu0
    %v1956 = vpop.trf.xlu0
    %v1957 = vpop.trf.xlu0
    %v1958 = vpop.trf.xlu0
    %v1959 = vpop.trf.xlu0
    %v1960 = vpop.trf.xlu0
    %1961 = vst [vmem:[#allocation4] sm:$0xff] %v1913
    %1962 = vst [vmem:[#allocation4 + $0x8] sm:$0xff] %v1945
    %1963 = vst [vmem:[#allocation4 + $0x10] sm:$0xff] %v1914
    %1964 = vst [vmem:[#allocation4 + $0x18] sm:$0xff] %v1946
    %1965 = vst [vmem:[#allocation4 + $0x20] sm:$0xff] %v1915
    %1966 = vst [vmem:[#allocation4 + $0x28] sm:$0xff] %v1947
    %1967 = vst [vmem:[#allocation4 + $0x30] sm:$0xff] %v1916
    %1968 = vst [vmem:[#allocation4 + $0x38] sm:$0xff] %v1948
    %1969 = vst.msk [vmem:[%s8] sm:$0xff] %vm60, %v1634
    %1970 = vst.msk [vmem:[%s8 + $0x8] sm:$0xff] %vm60, %v1636
    %1971 = vst.msk [vmem:[%s8 + $0x10] sm:$0xff] %vm60, %v1638
    %1972 = vst.msk [vmem:[%s8 + $0x18] sm:$0xff] %vm60, %v1640
    %1973 = vst.msk [vmem:[%s8 + $0x20] sm:$0xff] %vm60, %v1642
    %1974 = vst.msk [vmem:[%s8 + $0x28] sm:$0xff] %vm60, %v1644
    %1975 = vst.msk [vmem:[%s8 + $0x30] sm:$0xff] %vm60, %v1646
    %1976 = vst.msk [vmem:[%s8 + $0x38] sm:$0xff] %vm60, %v1648
    %1977 = vst.msk [vmem:[%s8 + $0x40] sm:$0xff] %vm60, %v1650
    %1978 = vst.msk [vmem:[%s8 + $0x48] sm:$0xff] %vm60, %v1652
    %1979 = vst.msk [vmem:[%s8 + $0x50] sm:$0xff] %vm60, %v1654
    %1980 = vst.msk [vmem:[%s8 + $0x58] sm:$0xff] %vm60, %v1656
    %1981 = vst.msk [vmem:[%s8 + $0x60] sm:$0xff] %vm60, %v1658
    %1982 = vst.msk [vmem:[%s8 + $0x68] sm:$0xff] %vm60, %v1660
    %1983 = vst.msk [vmem:[%s8 + $0x70] sm:$0xff] %vm60, %v1662
    %1984 = vst.msk [vmem:[%s8 + $0x78] sm:$0xff] %vm60, %v1664
    %1985 = vst.msk [vmem:[%s8 + $0x80] sm:$0xff] %vm60, %v1666
    %1986 = vst.msk [vmem:[%s8 + $0x88] sm:$0xff] %vm60, %v1668
    %1987 = vst.msk [vmem:[%s8 + $0x90] sm:$0xff] %vm60, %v1670
    %1988 = vst.msk [vmem:[%s8 + $0x98] sm:$0xff] %vm60, %v1672
    %1989 = vst.msk [vmem:[%s8 + $0xa0] sm:$0xff] %vm60, %v1674
    %1990 = vst.msk [vmem:[%s8 + $0xa8] sm:$0xff] %vm60, %v1676
    %1991 = vst.msk [vmem:[%s8 + $0xb0] sm:$0xff] %vm60, %v1678
    %1992 = vst.msk [vmem:[%s8 + $0xb8] sm:$0xff] %vm60, %v1680
    %1993 = vst.msk [vmem:[%s8 + $0xc0] sm:$0xff] %vm60, %v1682
    %1994 = vst.msk [vmem:[%s8 + $0xc8] sm:$0xff] %vm60, %v1684
    %1995 = vst.msk [vmem:[%s8 + $0xd0] sm:$0xff] %vm60, %v1686
    %1996 = vst.msk [vmem:[%s8 + $0xd8] sm:$0xff] %vm60, %v1688
    %1997 = vst.msk [vmem:[%s8 + $0xe0] sm:$0xff] %vm60, %v1690
    %1998 = vst.msk [vmem:[%s8 + $0xe8] sm:$0xff] %vm60, %v1692
    %1999 = vst.msk [vmem:[%s8 + $0xf0] sm:$0xff] %vm60, %v1694
    %2000 = vst.msk [vmem:[%s8 + $0xf8] sm:$0xff] %vm60, %v1696
    // Predicated region
    $region26: #{tpu_custom_call.1} parent=1 // pred_check
      _
    $region27: #{tpu_custom_call.1} parent=1 // pred_check_branch
      %2002 = sbr.rel (0) target = $region29
    $region28: #{tpu_custom_call.1} parent=1 // pred_region
      %s2004 = ssub.s32 1024, 1024
      %2005 = vsyncadd [#allocation3], %s2004
      %s2006 = sshll.u32 [#allocation2], 4
      %s2007 = int_to_ptr.vmem [resolvable:$true] %s2006
      %2012 = dma.vmem_to_hbm [thread:$0]  %s2007, 1024, %s6, [#allocation3], 256, 256, 16
    $region29: #{tpu_custom_call.1} parent=1 // pred_fallthru
      _
    // Predicated region
    $region30: #{tpu_custom_call.1} parent=1 // pred_check
      _
    $region31: #{tpu_custom_call.1} parent=1 // pred_check_branch
      %2014 = sbr.rel (0) target = $region33
    $region32: #{tpu_custom_call.1} parent=1 // pred_region
      %s2016 = ssub.s32 1024, 1024
      %2017 = vsyncadd [#allocation5], %s2016
      %s2018 = sshll.u32 [#allocation4], 4
      %s2019 = int_to_ptr.vmem [resolvable:$true] %s2018
      %2024 = dma.vmem_to_hbm [thread:$0]  %s2019, 1024, %s7, [#allocation5], 256, 256, 16
    $region33: #{tpu_custom_call.1} parent=1 // pred_fallthru
      _
    // Predicated region
    $region34: #{tpu_custom_call.1} parent=1 // pred_check
      _
    $region35: #{tpu_custom_call.1} parent=1 // pred_check_branch
      %2026 = sbr.rel (0) target = $region37
    $region36: #{tpu_custom_call.1} parent=1 // pred_region
      _
    $region37: #{tpu_custom_call.1} parent=1 // pred_fallthru
      _
    // Predicated region
    $region38: #{tpu_custom_call.1} parent=1 // pred_check
      _
    $region39: #{tpu_custom_call.1} parent=1 // pred_check_branch
      %2028 = sbr.rel (0) target = $region41
    $region40: #{tpu_custom_call.1} parent=1 // pred_region
      %2029 = dma.done [#allocation3], 1024
    $region41: #{tpu_custom_call.1} parent=1 // pred_fallthru
      _
    // Predicated region
    $region42: #{tpu_custom_call.1} parent=1 // pred_check
      _
    $region43: #{tpu_custom_call.1} parent=1 // pred_check_branch
      %2031 = sbr.rel (0) target = $region45
    $region44: #{tpu_custom_call.1} parent=1 // pred_region
      %2032 = dma.done [#allocation5], 1024
    $region45: #{tpu_custom_call.1} parent=1 // pred_fallthru
      _
    // Predicated region
    $region46: #{tpu_custom_call.1} parent=1 // pred_check
      _
    $region47: #{tpu_custom_call.1} parent=1 // pred_check_branch
      %2034 = sbr.rel (0) target = $region49
    $region48: #{tpu_custom_call.1} parent=1 // pred_region
      _
    $region49: #{tpu_custom_call.1} parent=1 // pred_fallthru
      _
    %2035 = vsyncpa [#allocation3], 1
    %2036 = vsyncpa [#allocation5], 1

</llo_original>
